<compile_context>
chip_gen: v7x
topology: tpu7x:2x2x1
jax: 0.10.0
libtpu: 0.0.40
codegen_flags: <defaults>
</compile_context>

<pallas_src>
import numpy as np
import jax
import jax.numpy as jnp
from jax import lax
from jax.experimental import pallas as pl
from jax.experimental.pallas import tpu as pltpu  # noqa: F401  (kept for TPU-specific extensions)

# Model hyper-parameters (small, consistent with the module's forward signature)
B = 2            # batch
S = 8            # sequence length
H = 32           # hidden size
NUM_HEADS = 4
HEAD_DIM = H // NUM_HEADS
SCALE = 1.0 / float(np.sqrt(HEAD_DIM))


def _mha_kernel(x_ref, amask_ref, w_ref, b_ref, out_ref):
    """Whole-batch multi-head self-attention in one invocation.

    x_ref     : (B*S, H)   flattened hidden states
    amask_ref : (B, S)     additive attention mask (broadcast over query rows)
    w_ref     : (H, 4H)    [Wq*scale | Wk | Wv | Wo*head_mask]
    b_ref     : (1, 4H)    [bq*scale | bk | bv | bo]
    out_ref   : (B, S*H)   lane-dense output rows (reshaped back in the wrapper)
    """
    x = x_ref[...].astype(jnp.float32)          # (16, 32)
    w = w_ref[...]                              # (32, 128)
    bias = b_ref[...]                           # (1, 128)
    amask = amask_ref[...].astype(jnp.float32)  # (2, 8)

    # Single fused QKV projection (scale already folded into the Q columns).
    qkv = jnp.dot(x, w[:, :3 * H], preferred_element_type=jnp.float32) + bias[:, :3 * H]
    wo = w[:, 3 * H:]                           # (32, 32), head_mask folded into rows
    bo = bias[:, 3 * H:]                        # (1, 32)

    out_rows = []
    for b in range(B):                          # static unroll over the tiny batch
        r0 = b * S
        qb = qkv[r0:r0 + S, 0 * H:1 * H]        # (S, H)
        kb = qkv[r0:r0 + S, 1 * H:2 * H]
        vb = qkv[r0:r0 + S, 2 * H:3 * H]
        am = amask[b:b + 1, :]                  # (1, S) -> broadcasts over query rows

        acc = jnp.zeros((S, H), jnp.float32)
        for h in range(NUM_HEADS):              # static unroll over heads
            lo = h * HEAD_DIM
            qs = qb[:, lo:lo + HEAD_DIM]        # (S, DH)
            ks = kb[:, lo:lo + HEAD_DIM]
            vs = vb[:, lo:lo + HEAD_DIM]

            # q @ k^T without an explicit transpose (MXU takes the transposed
            # operand natively via dot_general dimension numbers).
            scores = lax.dot_general(
                qs, ks, (((1,), (1,)), ((), ())),
                preferred_element_type=jnp.float32) + am          # (S, S)
            scores = scores - jnp.max(scores, axis=-1, keepdims=True)
            probs = jnp.exp(scores)
            probs = probs * pl.reciprocal(
                jnp.sum(probs, axis=-1, keepdims=True), approx=True)

            ctx_h = jnp.dot(probs, vs, preferred_element_type=jnp.float32)  # (S, DH)
            # Accumulate straight into the output projection; head_mask is
            # already folded into these rows of wo, so no per-head prob scale
            # and no lane-concat over heads is needed.
            acc = acc + jnp.dot(ctx_h, wo[lo:lo + HEAD_DIM, :],
                                preferred_element_type=jnp.float32)
        ob = acc + bo                            # (S, H)

        # Lane-dense store formatting: flatten (S, H) -> (1, S*H) with a lane
        # concat of row slices so the final write is a wide (>=128 lane)
        # unmasked store.
        out_rows.append(
            jnp.concatenate([ob[si:si + 1, :] for si in range(S)], axis=1))

    out_ref[...] = jnp.concatenate(out_rows, axis=0).astype(out_ref.dtype)


@jax.jit
def attention_pallas(hidden_states, attention_mask, head_mask, params):
    """hidden_states: (B, S, H); attention_mask: (B, 1, S); head_mask: (1, NUM_HEADS)."""
    wq, bq, wk, bk, wv, bv, wo, bo = params

    # Fold the 1/sqrt(d) scale into the Q projection and the multiplicative
    # post-softmax head mask into the rows of the output projection (both
    # mathematically exact), then pack everything into one lane-dense
    # (H, 4H) weight and (1, 4H) bias.
    hm = jnp.repeat(head_mask.reshape(NUM_HEADS), HEAD_DIM)                  # (H,)
    w_all = jnp.concatenate([wq * SCALE, wk, wv, wo * hm[:, None]], axis=1)  # (32, 128)
    b_all = jnp.concatenate([bq * SCALE, bk, bv, bo], axis=1)                # (1, 128)

    x_flat = hidden_states.reshape(B * S, H)
    amask = attention_mask.reshape(B, S)

    # Single invocation (no grid): at B=2, S=8, H=32 the kernel is pure
    # per-step / DMA-descriptor overhead, so every operand is passed whole as
    # a full-array VMEM block (default specs) with no pipelining.  On v7x one
    # could shard a batch grid across the two TensorCores instead, but at this
    # size removing grid steps wins.
    out_wide = pl.pallas_call(
        _mha_kernel,
        out_shape=jax.ShapeDtypeStruct((B, S * H), hidden_states.dtype),
    )(x_flat, amask, w_all, b_all)

    return out_wide.reshape(B, S, H)


def module_pipe_forward(hidden_states, head_mask, attention_mask, params):
    """Pallas equivalent of ModulePipe.forward: returns
    (wrapped_module_output, head_mask, attention_mask)."""
    out = attention_pallas(hidden_states, attention_mask, head_mask, params)
    return out, head_mask, attention_mask


def _reference(hidden_states, attention_mask, head_mask, params):
    """Pure-JAX reference for sanity checking."""
    wq, bq, wk, bk, wv, bv, wo, bo = params
    x = hidden_states.astype(jnp.float32)
    q = x @ wq + bq
    k = x @ wk + bk
    v = x @ wv + bv

    def split(t):  # (B, S, H) -> (B, nH, S, DH)
        return t.reshape(B, S, NUM_HEADS, HEAD_DIM).transpose(0, 2, 1, 3)

    qh, kh, vh = split(q), split(k), split(v)
    scores = jnp.einsum("bhqd,bhkd->bhqk", qh, kh) * SCALE
    scores = scores + attention_mask[:, None, :, :]           # (B,1,1,S) -> bcast
    probs = jax.nn.softmax(scores, axis=-1)
    probs = probs * head_mask[0][None, :, None, None]
    ctx = jnp.einsum("bhqk,bhkd->bhqd", probs, vh)
    ctx = ctx.transpose(0, 2, 1, 3).reshape(B, S, H)
    return ctx @ wo + bo


if __name__ == "__main__":
    key = jax.random.PRNGKey(0)
    k_hid, k_q, k_k, k_v, k_o, k_am = jax.random.split(key, 6)

    hidden_states = jax.random.normal(k_hid, (B, S, H), dtype=jnp.float32)
    # additive attention mask: 0 for attend, -1e9 for masked (last 2 keys of batch 1 masked)
    attention_mask = jnp.zeros((B, 1, S), dtype=jnp.float32)
    attention_mask = attention_mask.at[1, 0, -2:].set(-1e9)
    # multiplicative head mask: drop head 2
    head_mask = jnp.array([[1.0, 1.0, 0.0, 1.0]], dtype=jnp.float32)

    def init_w(k):
        return jax.random.normal(k, (H, H), dtype=jnp.float32) * 0.05

    params = (
        init_w(k_q), jnp.zeros((1, H), jnp.float32),
        init_w(k_k), jnp.zeros((1, H), jnp.float32),
        init_w(k_v), jnp.zeros((1, H), jnp.float32),
        init_w(k_o), jnp.zeros((1, H), jnp.float32),
    )

    out, hm_out, am_out = module_pipe_forward(
        hidden_states, head_mask, attention_mask, params)
    out = jax.block_until_ready(out)

    ref = _reference(hidden_states, attention_mask, head_mask, params)
    # slightly loose tolerance: softmax denominator uses the EUP approximate
    # reciprocal inside the kernel.
    np.testing.assert_allclose(np.asarray(out), np.asarray(ref),
                               rtol=2e-3, atol=2e-3)
    assert hm_out is head_mask and am_out is attention_mask

    print("KERNEL_OK")
</pallas_src>

<mosaic_0001>
module attributes {stable_mosaic.version = 11 : i64} {
  func.func @_mha_kernel(%arg0: memref<16x32xf32, #tpu.memory_space<vmem>>, %arg1: memref<2x8xf32, #tpu.memory_space<vmem>>, %arg2: memref<32x128xf32, #tpu.memory_space<vmem>>, %arg3: memref<1x128xf32, #tpu.memory_space<vmem>>, %arg4: memref<2x256xf32, #tpu.memory_space<vmem>>) attributes {dimension_semantics = [], scalar_prefetch = 0 : i64, scratch_operands = 0 : i64, tpu.core_type = #tpu.core_type<tc>} {
    %c0 = arith.constant 0 : index
    %c0_0 = arith.constant 0 : index
    %0 = vector.load %arg0[%c0, %c0_0] : memref<16x32xf32, #tpu.memory_space<vmem>>, vector<16x32xf32>
    %c0_1 = arith.constant 0 : index
    %c0_2 = arith.constant 0 : index
    %1 = vector.load %arg2[%c0_1, %c0_2] : memref<32x128xf32, #tpu.memory_space<vmem>>, vector<32x128xf32>
    %c0_3 = arith.constant 0 : index
    %c0_4 = arith.constant 0 : index
    %2 = vector.load %arg3[%c0_3, %c0_4] : memref<1x128xf32, #tpu.memory_space<vmem>>, vector<1x128xf32>
    %c0_5 = arith.constant 0 : index
    %c0_6 = arith.constant 0 : index
    %3 = vector.load %arg1[%c0_5, %c0_6] : memref<2x8xf32, #tpu.memory_space<vmem>>, vector<2x8xf32>
    %4 = vector.extract_strided_slice %1 {offsets = [0, 0], sizes = [32, 96], strides = [1, 1]} : vector<32x128xf32> to vector<32x96xf32>
    %cst = arith.constant dense<0.000000e+00> : vector<16x96xf32>
    %5 = tpu.matmul %0, %4, %cst {dimension_numbers = #tpu.dot_dimension_numbers<[1], [0], [0], [1], [0, 0, 1, 1], [], []>} : vector<16x32xf32>, vector<32x96xf32>, vector<16x96xf32> -> vector<16x96xf32>
    %6 = vector.extract_strided_slice %2 {offsets = [0, 0], sizes = [1, 96], strides = [1, 1]} : vector<1x128xf32> to vector<1x96xf32>
    %7 = vector.broadcast %6 : vector<1x96xf32> to vector<16x96xf32>
    %8 = arith.addf %5, %7 : vector<16x96xf32>
    %9 = vector.extract_strided_slice %1 {offsets = [0, 96], sizes = [32, 32], strides = [1, 1]} : vector<32x128xf32> to vector<32x32xf32>
    %10 = vector.extract_strided_slice %2 {offsets = [0, 96], sizes = [1, 32], strides = [1, 1]} : vector<1x128xf32> to vector<1x32xf32>
    %11 = vector.extract_strided_slice %8 {offsets = [0, 0], sizes = [8, 32], strides = [1, 1]} : vector<16x96xf32> to vector<8x32xf32>
    %12 = vector.extract_strided_slice %8 {offsets = [0, 32], sizes = [8, 32], strides = [1, 1]} : vector<16x96xf32> to vector<8x32xf32>
    %13 = vector.extract_strided_slice %8 {offsets = [0, 64], sizes = [8, 32], strides = [1, 1]} : vector<16x96xf32> to vector<8x32xf32>
    %14 = vector.extract_strided_slice %3 {offsets = [0, 0], sizes = [1, 8], strides = [1, 1]} : vector<2x8xf32> to vector<1x8xf32>
    %cst_7 = arith.constant 0.000000e+00 : f32
    %15 = vector.broadcast %cst_7 : f32 to vector<8x32xf32>
    %16 = vector.extract_strided_slice %11 {offsets = [0, 0], sizes = [8, 8], strides = [1, 1]} : vector<8x32xf32> to vector<8x8xf32>
    %17 = vector.extract_strided_slice %12 {offsets = [0, 0], sizes = [8, 8], strides = [1, 1]} : vector<8x32xf32> to vector<8x8xf32>
    %18 = vector.extract_strided_slice %13 {offsets = [0, 0], sizes = [8, 8], strides = [1, 1]} : vector<8x32xf32> to vector<8x8xf32>
    %cst_8 = arith.constant dense<0.000000e+00> : vector<8x8xf32>
    %19 = tpu.matmul %16, %17, %cst_8 {dimension_numbers = #tpu.dot_dimension_numbers<[1], [1], [0], [0], [0, 0, 1, 0], [], []>} : vector<8x8xf32>, vector<8x8xf32>, vector<8x8xf32> -> vector<8x8xf32>
    %20 = vector.broadcast %14 : vector<1x8xf32> to vector<8x8xf32>
    %21 = arith.addf %19, %20 : vector<8x8xf32>
    %cst_9 = arith.constant dense<0xFF800000> : vector<8xf32>
    %22 = vector.multi_reduction <maximumf>, %21, %cst_9 [1] : vector<8x8xf32> to vector<8xf32>
    %23 = vector.shape_cast %22 : vector<8xf32> to vector<8x1xf32>
    %24 = vector.broadcast %23 : vector<8x1xf32> to vector<8x8xf32>
    %25 = arith.subf %21, %24 : vector<8x8xf32>
    %26 = math.exp %25 : vector<8x8xf32>
    %cst_10 = arith.constant dense<0.000000e+00> : vector<8xf32>
    %27 = vector.multi_reduction <add>, %26, %cst_10 [1] : vector<8x8xf32> to vector<8xf32>
    %28 = vector.shape_cast %27 : vector<8xf32> to vector<8x1xf32>
    %29 = tpu.reciprocal %28 {approx = true} : vector<8x1xf32> -> vector<8x1xf32>
    %30 = vector.broadcast %29 : vector<8x1xf32> to vector<8x8xf32>
    %31 = arith.mulf %26, %30 : vector<8x8xf32>
    %cst_11 = arith.constant dense<0.000000e+00> : vector<8x8xf32>
    %32 = tpu.matmul %31, %18, %cst_11 {dimension_numbers = #tpu.dot_dimension_numbers<[1], [0], [0], [1], [0, 0, 1, 1], [], []>} : vector<8x8xf32>, vector<8x8xf32>, vector<8x8xf32> -> vector<8x8xf32>
    %33 = vector.extract_strided_slice %9 {offsets = [0, 0], sizes = [8, 32], strides = [1, 1]} : vector<32x32xf32> to vector<8x32xf32>
    %cst_12 = arith.constant dense<0.000000e+00> : vector<8x32xf32>
    %34 = tpu.matmul %32, %33, %cst_12 {dimension_numbers = #tpu.dot_dimension_numbers<[1], [0], [0], [1], [0, 0, 1, 1], [], []>} : vector<8x8xf32>, vector<8x32xf32>, vector<8x32xf32> -> vector<8x32xf32>
    %35 = arith.addf %15, %34 : vector<8x32xf32>
    %36 = vector.extract_strided_slice %11 {offsets = [0, 8], sizes = [8, 8], strides = [1, 1]} : vector<8x32xf32> to vector<8x8xf32>
    %37 = vector.extract_strided_slice %12 {offsets = [0, 8], sizes = [8, 8], strides = [1, 1]} : vector<8x32xf32> to vector<8x8xf32>
    %38 = vector.extract_strided_slice %13 {offsets = [0, 8], sizes = [8, 8], strides = [1, 1]} : vector<8x32xf32> to vector<8x8xf32>
    %cst_13 = arith.constant dense<0.000000e+00> : vector<8x8xf32>
    %39 = tpu.matmul %36, %37, %cst_13 {dimension_numbers = #tpu.dot_dimension_numbers<[1], [1], [0], [0], [0, 0, 1, 0], [], []>} : vector<8x8xf32>, vector<8x8xf32>, vector<8x8xf32> -> vector<8x8xf32>
    %40 = vector.broadcast %14 : vector<1x8xf32> to vector<8x8xf32>
    %41 = arith.addf %39, %40 : vector<8x8xf32>
    %cst_14 = arith.constant dense<0xFF800000> : vector<8xf32>
    %42 = vector.multi_reduction <maximumf>, %41, %cst_14 [1] : vector<8x8xf32> to vector<8xf32>
    %43 = vector.shape_cast %42 : vector<8xf32> to vector<8x1xf32>
    %44 = vector.broadcast %43 : vector<8x1xf32> to vector<8x8xf32>
    %45 = arith.subf %41, %44 : vector<8x8xf32>
    %46 = math.exp %45 : vector<8x8xf32>
    %cst_15 = arith.constant dense<0.000000e+00> : vector<8xf32>
    %47 = vector.multi_reduction <add>, %46, %cst_15 [1] : vector<8x8xf32> to vector<8xf32>
    %48 = vector.shape_cast %47 : vector<8xf32> to vector<8x1xf32>
    %49 = tpu.reciprocal %48 {approx = true} : vector<8x1xf32> -> vector<8x1xf32>
    %50 = vector.broadcast %49 : vector<8x1xf32> to vector<8x8xf32>
    %51 = arith.mulf %46, %50 : vector<8x8xf32>
    %cst_16 = arith.constant dense<0.000000e+00> : vector<8x8xf32>
    %52 = tpu.matmul %51, %38, %cst_16 {dimension_numbers = #tpu.dot_dimension_numbers<[1], [0], [0], [1], [0, 0, 1, 1], [], []>} : vector<8x8xf32>, vector<8x8xf32>, vector<8x8xf32> -> vector<8x8xf32>
    %53 = vector.extract_strided_slice %9 {offsets = [8, 0], sizes = [8, 32], strides = [1, 1]} : vector<32x32xf32> to vector<8x32xf32>
    %cst_17 = arith.constant dense<0.000000e+00> : vector<8x32xf32>
    %54 = tpu.matmul %52, %53, %cst_17 {dimension_numbers = #tpu.dot_dimension_numbers<[1], [0], [0], [1], [0, 0, 1, 1], [], []>} : vector<8x8xf32>, vector<8x32xf32>, vector<8x32xf32> -> vector<8x32xf32>
    %55 = arith.addf %35, %54 : vector<8x32xf32>
    %56 = vector.extract_strided_slice %11 {offsets = [0, 16], sizes = [8, 8], strides = [1, 1]} : vector<8x32xf32> to vector<8x8xf32>
    %57 = vector.extract_strided_slice %12 {offsets = [0, 16], sizes = [8, 8], strides = [1, 1]} : vector<8x32xf32> to vector<8x8xf32>
    %58 = vector.extract_strided_slice %13 {offsets = [0, 16], sizes = [8, 8], strides = [1, 1]} : vector<8x32xf32> to vector<8x8xf32>
    %cst_18 = arith.constant dense<0.000000e+00> : vector<8x8xf32>
    %59 = tpu.matmul %56, %57, %cst_18 {dimension_numbers = #tpu.dot_dimension_numbers<[1], [1], [0], [0], [0, 0, 1, 0], [], []>} : vector<8x8xf32>, vector<8x8xf32>, vector<8x8xf32> -> vector<8x8xf32>
    %60 = vector.broadcast %14 : vector<1x8xf32> to vector<8x8xf32>
    %61 = arith.addf %59, %60 : vector<8x8xf32>
    %cst_19 = arith.constant dense<0xFF800000> : vector<8xf32>
    %62 = vector.multi_reduction <maximumf>, %61, %cst_19 [1] : vector<8x8xf32> to vector<8xf32>
    %63 = vector.shape_cast %62 : vector<8xf32> to vector<8x1xf32>
    %64 = vector.broadcast %63 : vector<8x1xf32> to vector<8x8xf32>
    %65 = arith.subf %61, %64 : vector<8x8xf32>
    %66 = math.exp %65 : vector<8x8xf32>
    %cst_20 = arith.constant dense<0.000000e+00> : vector<8xf32>
    %67 = vector.multi_reduction <add>, %66, %cst_20 [1] : vector<8x8xf32> to vector<8xf32>
    %68 = vector.shape_cast %67 : vector<8xf32> to vector<8x1xf32>
    %69 = tpu.reciprocal %68 {approx = true} : vector<8x1xf32> -> vector<8x1xf32>
    %70 = vector.broadcast %69 : vector<8x1xf32> to vector<8x8xf32>
    %71 = arith.mulf %66, %70 : vector<8x8xf32>
    %cst_21 = arith.constant dense<0.000000e+00> : vector<8x8xf32>
    %72 = tpu.matmul %71, %58, %cst_21 {dimension_numbers = #tpu.dot_dimension_numbers<[1], [0], [0], [1], [0, 0, 1, 1], [], []>} : vector<8x8xf32>, vector<8x8xf32>, vector<8x8xf32> -> vector<8x8xf32>
    %73 = vector.extract_strided_slice %9 {offsets = [16, 0], sizes = [8, 32], strides = [1, 1]} : vector<32x32xf32> to vector<8x32xf32>
    %cst_22 = arith.constant dense<0.000000e+00> : vector<8x32xf32>
    %74 = tpu.matmul %72, %73, %cst_22 {dimension_numbers = #tpu.dot_dimension_numbers<[1], [0], [0], [1], [0, 0, 1, 1], [], []>} : vector<8x8xf32>, vector<8x32xf32>, vector<8x32xf32> -> vector<8x32xf32>
    %75 = arith.addf %55, %74 : vector<8x32xf32>
    %76 = vector.extract_strided_slice %11 {offsets = [0, 24], sizes = [8, 8], strides = [1, 1]} : vector<8x32xf32> to vector<8x8xf32>
    %77 = vector.extract_strided_slice %12 {offsets = [0, 24], sizes = [8, 8], strides = [1, 1]} : vector<8x32xf32> to vector<8x8xf32>
    %78 = vector.extract_strided_slice %13 {offsets = [0, 24], sizes = [8, 8], strides = [1, 1]} : vector<8x32xf32> to vector<8x8xf32>
    %cst_23 = arith.constant dense<0.000000e+00> : vector<8x8xf32>
    %79 = tpu.matmul %76, %77, %cst_23 {dimension_numbers = #tpu.dot_dimension_numbers<[1], [1], [0], [0], [0, 0, 1, 0], [], []>} : vector<8x8xf32>, vector<8x8xf32>, vector<8x8xf32> -> vector<8x8xf32>
    %80 = vector.broadcast %14 : vector<1x8xf32> to vector<8x8xf32>
    %81 = arith.addf %79, %80 : vector<8x8xf32>
    %cst_24 = arith.constant dense<0xFF800000> : vector<8xf32>
    %82 = vector.multi_reduction <maximumf>, %81, %cst_24 [1] : vector<8x8xf32> to vector<8xf32>
    %83 = vector.shape_cast %82 : vector<8xf32> to vector<8x1xf32>
    %84 = vector.broadcast %83 : vector<8x1xf32> to vector<8x8xf32>
    %85 = arith.subf %81, %84 : vector<8x8xf32>
    %86 = math.exp %85 : vector<8x8xf32>
    %cst_25 = arith.constant dense<0.000000e+00> : vector<8xf32>
    %87 = vector.multi_reduction <add>, %86, %cst_25 [1] : vector<8x8xf32> to vector<8xf32>
    %88 = vector.shape_cast %87 : vector<8xf32> to vector<8x1xf32>
    %89 = tpu.reciprocal %88 {approx = true} : vector<8x1xf32> -> vector<8x1xf32>
    %90 = vector.broadcast %89 : vector<8x1xf32> to vector<8x8xf32>
    %91 = arith.mulf %86, %90 : vector<8x8xf32>
    %cst_26 = arith.constant dense<0.000000e+00> : vector<8x8xf32>
    %92 = tpu.matmul %91, %78, %cst_26 {dimension_numbers = #tpu.dot_dimension_numbers<[1], [0], [0], [1], [0, 0, 1, 1], [], []>} : vector<8x8xf32>, vector<8x8xf32>, vector<8x8xf32> -> vector<8x8xf32>
    %93 = vector.extract_strided_slice %9 {offsets = [24, 0], sizes = [8, 32], strides = [1, 1]} : vector<32x32xf32> to vector<8x32xf32>
    %cst_27 = arith.constant dense<0.000000e+00> : vector<8x32xf32>
    %94 = tpu.matmul %92, %93, %cst_27 {dimension_numbers = #tpu.dot_dimension_numbers<[1], [0], [0], [1], [0, 0, 1, 1], [], []>} : vector<8x8xf32>, vector<8x32xf32>, vector<8x32xf32> -> vector<8x32xf32>
    %95 = arith.addf %75, %94 : vector<8x32xf32>
    %96 = vector.broadcast %10 : vector<1x32xf32> to vector<8x32xf32>
    %97 = arith.addf %95, %96 : vector<8x32xf32>
    %98 = vector.extract_strided_slice %97 {offsets = [0, 0], sizes = [1, 32], strides = [1, 1]} : vector<8x32xf32> to vector<1x32xf32>
    %99 = vector.extract_strided_slice %97 {offsets = [1, 0], sizes = [1, 32], strides = [1, 1]} : vector<8x32xf32> to vector<1x32xf32>
    %100 = vector.extract_strided_slice %97 {offsets = [2, 0], sizes = [1, 32], strides = [1, 1]} : vector<8x32xf32> to vector<1x32xf32>
    %101 = vector.extract_strided_slice %97 {offsets = [3, 0], sizes = [1, 32], strides = [1, 1]} : vector<8x32xf32> to vector<1x32xf32>
    %102 = vector.extract_strided_slice %97 {offsets = [4, 0], sizes = [1, 32], strides = [1, 1]} : vector<8x32xf32> to vector<1x32xf32>
    %103 = vector.extract_strided_slice %97 {offsets = [5, 0], sizes = [1, 32], strides = [1, 1]} : vector<8x32xf32> to vector<1x32xf32>
    %104 = vector.extract_strided_slice %97 {offsets = [6, 0], sizes = [1, 32], strides = [1, 1]} : vector<8x32xf32> to vector<1x32xf32>
    %105 = vector.extract_strided_slice %97 {offsets = [7, 0], sizes = [1, 32], strides = [1, 1]} : vector<8x32xf32> to vector<1x32xf32>
    %106 = tpu.concatenate %98, %99, %100, %101, %102, %103, %104, %105 in 1 : vector<1x32xf32>, vector<1x32xf32>, vector<1x32xf32>, vector<1x32xf32>, vector<1x32xf32>, vector<1x32xf32>, vector<1x32xf32>, vector<1x32xf32> -> vector<1x256xf32>
    %107 = vector.extract_strided_slice %8 {offsets = [8, 0], sizes = [8, 32], strides = [1, 1]} : vector<16x96xf32> to vector<8x32xf32>
    %108 = vector.extract_strided_slice %8 {offsets = [8, 32], sizes = [8, 32], strides = [1, 1]} : vector<16x96xf32> to vector<8x32xf32>
    %109 = vector.extract_strided_slice %8 {offsets = [8, 64], sizes = [8, 32], strides = [1, 1]} : vector<16x96xf32> to vector<8x32xf32>
    %110 = vector.extract_strided_slice %3 {offsets = [1, 0], sizes = [1, 8], strides = [1, 1]} : vector<2x8xf32> to vector<1x8xf32>
    %cst_28 = arith.constant 0.000000e+00 : f32
    %111 = vector.broadcast %cst_28 : f32 to vector<8x32xf32>
    %112 = vector.extract_strided_slice %107 {offsets = [0, 0], sizes = [8, 8], strides = [1, 1]} : vector<8x32xf32> to vector<8x8xf32>
    %113 = vector.extract_strided_slice %108 {offsets = [0, 0], sizes = [8, 8], strides = [1, 1]} : vector<8x32xf32> to vector<8x8xf32>
    %114 = vector.extract_strided_slice %109 {offsets = [0, 0], sizes = [8, 8], strides = [1, 1]} : vector<8x32xf32> to vector<8x8xf32>
    %cst_29 = arith.constant dense<0.000000e+00> : vector<8x8xf32>
    %115 = tpu.matmul %112, %113, %cst_29 {dimension_numbers = #tpu.dot_dimension_numbers<[1], [1], [0], [0], [0, 0, 1, 0], [], []>} : vector<8x8xf32>, vector<8x8xf32>, vector<8x8xf32> -> vector<8x8xf32>
    %116 = vector.broadcast %110 : vector<1x8xf32> to vector<8x8xf32>
    %117 = arith.addf %115, %116 : vector<8x8xf32>
    %cst_30 = arith.constant dense<0xFF800000> : vector<8xf32>
    %118 = vector.multi_reduction <maximumf>, %117, %cst_30 [1] : vector<8x8xf32> to vector<8xf32>
    %119 = vector.shape_cast %118 : vector<8xf32> to vector<8x1xf32>
    %120 = vector.broadcast %119 : vector<8x1xf32> to vector<8x8xf32>
    %121 = arith.subf %117, %120 : vector<8x8xf32>
    %122 = math.exp %121 : vector<8x8xf32>
    %cst_31 = arith.constant dense<0.000000e+00> : vector<8xf32>
    %123 = vector.multi_reduction <add>, %122, %cst_31 [1] : vector<8x8xf32> to vector<8xf32>
    %124 = vector.shape_cast %123 : vector<8xf32> to vector<8x1xf32>
    %125 = tpu.reciprocal %124 {approx = true} : vector<8x1xf32> -> vector<8x1xf32>
    %126 = vector.broadcast %125 : vector<8x1xf32> to vector<8x8xf32>
    %127 = arith.mulf %122, %126 : vector<8x8xf32>
    %cst_32 = arith.constant dense<0.000000e+00> : vector<8x8xf32>
    %128 = tpu.matmul %127, %114, %cst_32 {dimension_numbers = #tpu.dot_dimension_numbers<[1], [0], [0], [1], [0, 0, 1, 1], [], []>} : vector<8x8xf32>, vector<8x8xf32>, vector<8x8xf32> -> vector<8x8xf32>
    %129 = vector.extract_strided_slice %9 {offsets = [0, 0], sizes = [8, 32], strides = [1, 1]} : vector<32x32xf32> to vector<8x32xf32>
    %cst_33 = arith.constant dense<0.000000e+00> : vector<8x32xf32>
    %130 = tpu.matmul %128, %129, %cst_33 {dimension_numbers = #tpu.dot_dimension_numbers<[1], [0], [0], [1], [0, 0, 1, 1], [], []>} : vector<8x8xf32>, vector<8x32xf32>, vector<8x32xf32> -> vector<8x32xf32>
    %131 = arith.addf %111, %130 : vector<8x32xf32>
    %132 = vector.extract_strided_slice %107 {offsets = [0, 8], sizes = [8, 8], strides = [1, 1]} : vector<8x32xf32> to vector<8x8xf32>
    %133 = vector.extract_strided_slice %108 {offsets = [0, 8], sizes = [8, 8], strides = [1, 1]} : vector<8x32xf32> to vector<8x8xf32>
    %134 = vector.extract_strided_slice %109 {offsets = [0, 8], sizes = [8, 8], strides = [1, 1]} : vector<8x32xf32> to vector<8x8xf32>
    %cst_34 = arith.constant dense<0.000000e+00> : vector<8x8xf32>
    %135 = tpu.matmul %132, %133, %cst_34 {dimension_numbers = #tpu.dot_dimension_numbers<[1], [1], [0], [0], [0, 0, 1, 0], [], []>} : vector<8x8xf32>, vector<8x8xf32>, vector<8x8xf32> -> vector<8x8xf32>
    %136 = vector.broadcast %110 : vector<1x8xf32> to vector<8x8xf32>
    %137 = arith.addf %135, %136 : vector<8x8xf32>
    %cst_35 = arith.constant dense<0xFF800000> : vector<8xf32>
    %138 = vector.multi_reduction <maximumf>, %137, %cst_35 [1] : vector<8x8xf32> to vector<8xf32>
    %139 = vector.shape_cast %138 : vector<8xf32> to vector<8x1xf32>
    %140 = vector.broadcast %139 : vector<8x1xf32> to vector<8x8xf32>
    %141 = arith.subf %137, %140 : vector<8x8xf32>
    %142 = math.exp %141 : vector<8x8xf32>
    %cst_36 = arith.constant dense<0.000000e+00> : vector<8xf32>
    %143 = vector.multi_reduction <add>, %142, %cst_36 [1] : vector<8x8xf32> to vector<8xf32>
    %144 = vector.shape_cast %143 : vector<8xf32> to vector<8x1xf32>
    %145 = tpu.reciprocal %144 {approx = true} : vector<8x1xf32> -> vector<8x1xf32>
    %146 = vector.broadcast %145 : vector<8x1xf32> to vector<8x8xf32>
    %147 = arith.mulf %142, %146 : vector<8x8xf32>
    %cst_37 = arith.constant dense<0.000000e+00> : vector<8x8xf32>
    %148 = tpu.matmul %147, %134, %cst_37 {dimension_numbers = #tpu.dot_dimension_numbers<[1], [0], [0], [1], [0, 0, 1, 1], [], []>} : vector<8x8xf32>, vector<8x8xf32>, vector<8x8xf32> -> vector<8x8xf32>
    %149 = vector.extract_strided_slice %9 {offsets = [8, 0], sizes = [8, 32], strides = [1, 1]} : vector<32x32xf32> to vector<8x32xf32>
    %cst_38 = arith.constant dense<0.000000e+00> : vector<8x32xf32>
    %150 = tpu.matmul %148, %149, %cst_38 {dimension_numbers = #tpu.dot_dimension_numbers<[1], [0], [0], [1], [0, 0, 1, 1], [], []>} : vector<8x8xf32>, vector<8x32xf32>, vector<8x32xf32> -> vector<8x32xf32>
    %151 = arith.addf %131, %150 : vector<8x32xf32>
    %152 = vector.extract_strided_slice %107 {offsets = [0, 16], sizes = [8, 8], strides = [1, 1]} : vector<8x32xf32> to vector<8x8xf32>
    %153 = vector.extract_strided_slice %108 {offsets = [0, 16], sizes = [8, 8], strides = [1, 1]} : vector<8x32xf32> to vector<8x8xf32>
    %154 = vector.extract_strided_slice %109 {offsets = [0, 16], sizes = [8, 8], strides = [1, 1]} : vector<8x32xf32> to vector<8x8xf32>
    %cst_39 = arith.constant dense<0.000000e+00> : vector<8x8xf32>
    %155 = tpu.matmul %152, %153, %cst_39 {dimension_numbers = #tpu.dot_dimension_numbers<[1], [1], [0], [0], [0, 0, 1, 0], [], []>} : vector<8x8xf32>, vector<8x8xf32>, vector<8x8xf32> -> vector<8x8xf32>
    %156 = vector.broadcast %110 : vector<1x8xf32> to vector<8x8xf32>
    %157 = arith.addf %155, %156 : vector<8x8xf32>
    %cst_40 = arith.constant dense<0xFF800000> : vector<8xf32>
    %158 = vector.multi_reduction <maximumf>, %157, %cst_40 [1] : vector<8x8xf32> to vector<8xf32>
    %159 = vector.shape_cast %158 : vector<8xf32> to vector<8x1xf32>
    %160 = vector.broadcast %159 : vector<8x1xf32> to vector<8x8xf32>
    %161 = arith.subf %157, %160 : vector<8x8xf32>
    %162 = math.exp %161 : vector<8x8xf32>
    %cst_41 = arith.constant dense<0.000000e+00> : vector<8xf32>
    %163 = vector.multi_reduction <add>, %162, %cst_41 [1] : vector<8x8xf32> to vector<8xf32>
    %164 = vector.shape_cast %163 : vector<8xf32> to vector<8x1xf32>
    %165 = tpu.reciprocal %164 {approx = true} : vector<8x1xf32> -> vector<8x1xf32>
    %166 = vector.broadcast %165 : vector<8x1xf32> to vector<8x8xf32>
    %167 = arith.mulf %162, %166 : vector<8x8xf32>
    %cst_42 = arith.constant dense<0.000000e+00> : vector<8x8xf32>
    %168 = tpu.matmul %167, %154, %cst_42 {dimension_numbers = #tpu.dot_dimension_numbers<[1], [0], [0], [1], [0, 0, 1, 1], [], []>} : vector<8x8xf32>, vector<8x8xf32>, vector<8x8xf32> -> vector<8x8xf32>
    %169 = vector.extract_strided_slice %9 {offsets = [16, 0], sizes = [8, 32], strides = [1, 1]} : vector<32x32xf32> to vector<8x32xf32>
    %cst_43 = arith.constant dense<0.000000e+00> : vector<8x32xf32>
    %170 = tpu.matmul %168, %169, %cst_43 {dimension_numbers = #tpu.dot_dimension_numbers<[1], [0], [0], [1], [0, 0, 1, 1], [], []>} : vector<8x8xf32>, vector<8x32xf32>, vector<8x32xf32> -> vector<8x32xf32>
    %171 = arith.addf %151, %170 : vector<8x32xf32>
    %172 = vector.extract_strided_slice %107 {offsets = [0, 24], sizes = [8, 8], strides = [1, 1]} : vector<8x32xf32> to vector<8x8xf32>
    %173 = vector.extract_strided_slice %108 {offsets = [0, 24], sizes = [8, 8], strides = [1, 1]} : vector<8x32xf32> to vector<8x8xf32>
    %174 = vector.extract_strided_slice %109 {offsets = [0, 24], sizes = [8, 8], strides = [1, 1]} : vector<8x32xf32> to vector<8x8xf32>
    %cst_44 = arith.constant dense<0.000000e+00> : vector<8x8xf32>
    %175 = tpu.matmul %172, %173, %cst_44 {dimension_numbers = #tpu.dot_dimension_numbers<[1], [1], [0], [0], [0, 0, 1, 0], [], []>} : vector<8x8xf32>, vector<8x8xf32>, vector<8x8xf32> -> vector<8x8xf32>
    %176 = vector.broadcast %110 : vector<1x8xf32> to vector<8x8xf32>
    %177 = arith.addf %175, %176 : vector<8x8xf32>
    %cst_45 = arith.constant dense<0xFF800000> : vector<8xf32>
    %178 = vector.multi_reduction <maximumf>, %177, %cst_45 [1] : vector<8x8xf32> to vector<8xf32>
    %179 = vector.shape_cast %178 : vector<8xf32> to vector<8x1xf32>
    %180 = vector.broadcast %179 : vector<8x1xf32> to vector<8x8xf32>
    %181 = arith.subf %177, %180 : vector<8x8xf32>
    %182 = math.exp %181 : vector<8x8xf32>
    %cst_46 = arith.constant dense<0.000000e+00> : vector<8xf32>
    %183 = vector.multi_reduction <add>, %182, %cst_46 [1] : vector<8x8xf32> to vector<8xf32>
    %184 = vector.shape_cast %183 : vector<8xf32> to vector<8x1xf32>
    %185 = tpu.reciprocal %184 {approx = true} : vector<8x1xf32> -> vector<8x1xf32>
    %186 = vector.broadcast %185 : vector<8x1xf32> to vector<8x8xf32>
    %187 = arith.mulf %182, %186 : vector<8x8xf32>
    %cst_47 = arith.constant dense<0.000000e+00> : vector<8x8xf32>
    %188 = tpu.matmul %187, %174, %cst_47 {dimension_numbers = #tpu.dot_dimension_numbers<[1], [0], [0], [1], [0, 0, 1, 1], [], []>} : vector<8x8xf32>, vector<8x8xf32>, vector<8x8xf32> -> vector<8x8xf32>
    %189 = vector.extract_strided_slice %9 {offsets = [24, 0], sizes = [8, 32], strides = [1, 1]} : vector<32x32xf32> to vector<8x32xf32>
    %cst_48 = arith.constant dense<0.000000e+00> : vector<8x32xf32>
    %190 = tpu.matmul %188, %189, %cst_48 {dimension_numbers = #tpu.dot_dimension_numbers<[1], [0], [0], [1], [0, 0, 1, 1], [], []>} : vector<8x8xf32>, vector<8x32xf32>, vector<8x32xf32> -> vector<8x32xf32>
    %191 = arith.addf %171, %190 : vector<8x32xf32>
    %192 = vector.broadcast %10 : vector<1x32xf32> to vector<8x32xf32>
    %193 = arith.addf %191, %192 : vector<8x32xf32>
    %194 = vector.extract_strided_slice %193 {offsets = [0, 0], sizes = [1, 32], strides = [1, 1]} : vector<8x32xf32> to vector<1x32xf32>
    %195 = vector.extract_strided_slice %193 {offsets = [1, 0], sizes = [1, 32], strides = [1, 1]} : vector<8x32xf32> to vector<1x32xf32>
    %196 = vector.extract_strided_slice %193 {offsets = [2, 0], sizes = [1, 32], strides = [1, 1]} : vector<8x32xf32> to vector<1x32xf32>
    %197 = vector.extract_strided_slice %193 {offsets = [3, 0], sizes = [1, 32], strides = [1, 1]} : vector<8x32xf32> to vector<1x32xf32>
    %198 = vector.extract_strided_slice %193 {offsets = [4, 0], sizes = [1, 32], strides = [1, 1]} : vector<8x32xf32> to vector<1x32xf32>
    %199 = vector.extract_strided_slice %193 {offsets = [5, 0], sizes = [1, 32], strides = [1, 1]} : vector<8x32xf32> to vector<1x32xf32>
    %200 = vector.extract_strided_slice %193 {offsets = [6, 0], sizes = [1, 32], strides = [1, 1]} : vector<8x32xf32> to vector<1x32xf32>
    %201 = vector.extract_strided_slice %193 {offsets = [7, 0], sizes = [1, 32], strides = [1, 1]} : vector<8x32xf32> to vector<1x32xf32>
    %202 = tpu.concatenate %194, %195, %196, %197, %198, %199, %200, %201 in 1 : vector<1x32xf32>, vector<1x32xf32>, vector<1x32xf32>, vector<1x32xf32>, vector<1x32xf32>, vector<1x32xf32>, vector<1x32xf32>, vector<1x32xf32> -> vector<1x256xf32>
    %203 = tpu.concatenate %106, %202 in 0 : vector<1x256xf32>, vector<1x256xf32> -> vector<2x256xf32>
    %c0_49 = arith.constant 0 : index
    %c0_50 = arith.constant 0 : index
    %204 = vector.load %arg4[%c0_49, %c0_50] : memref<2x256xf32, #tpu.memory_space<vmem>>, vector<2x256xf32>
    tpu.vector_store %arg4[%c0_49, %c0_50], %203 {strides = array<i32>} : memref<2x256xf32, #tpu.memory_space<vmem>>, vector<2x256xf32>,
    return
  }
}

</mosaic_0001>

<llo_original>
// kernel: mul.12
$region0: #{mul.12}
  %s0 = inlined_call_operand.vmem [shape: f32[4,8], index: 0, kind: input, shape index: {}]
  %s1 = inlined_call_operand.vmem [shape: f32[32], index: 1, kind: output, shape index: {}]
  $region1: #{mul.12} parent=0
    #allocation0 [shape = 'u8[4096]{0}', space=vmem, size = 0x1000, scoped, tag = 'scoped mem for output reshape']
    #allocation1 [shape = 'u8[4096]{0}', space=vmem, size = 0x1000, scoped, tag = 'scoped mem for input reshape']
    %s3 = sshllo.u32 0, 4
    %v4 = vld [vmem:[%s0] sm:%s3]
    %5 = vst [vmem:[#allocation1] sm:%s3] %v4
    %v6 = vld [vmem:[#allocation1] sm:$0x1]
    %vm7 = vcmask 64512
    %8 = vst.msk [vmem:[#allocation0] sm:$0x1] %vm7, %v6
    %s9 = scalar_lea.vmem [#allocation1], 3
    %v10 = vld [vmem:[%s9] sm:$0x1]
    %11 = vrot.lane.b32.xlu0 %v10, 24
    %v12 = vpop.permute.xlu0 %11
    %vm13 = vcmask 261312
    %14 = vst.msk [vmem:[#allocation0] sm:$0x1] %vm13, %v12
    %s15 = scalar_lea.vmem [#allocation1], 2
    %v16 = vld [vmem:[%s15] sm:$0x1]
    %17 = vrot.lane.b32.xlu0 %v16, 16
    %v18 = vpop.permute.xlu0 %17
    %vm19 = vcmask 195712
    %20 = vst.msk [vmem:[#allocation0] sm:$0x1] %vm19, %v18
    %s21 = scalar_lea.vmem [#allocation1], 1
    %v22 = vld [vmem:[%s21] sm:$0x1]
    %23 = vrot.lane.b32.xlu0 %v22, 8
    %v24 = vpop.permute.xlu0 %23
    %vm25 = vcmask 130112
    %26 = vst.msk [vmem:[#allocation0] sm:$0x1] %vm25, %v24
    %s28 = sshllo.u32 0, 1
    %v30 = vld [vmem:[#allocation0] sm:%s28]
    %s31 = sshllo.u32 0, 1
    %32 = vst [vmem:[%s1] sm:%s31] %v30

// kernel: attention_pallas.1
$region0: #{attention_pallas.1}
  #allocation0 [shape = 'u32[]', space=smem, size = 0x4, offset = 0x4, fixed_abs, tag = 'smem constant byte address 0x4 - core index']
  #allocation1 [shape = 'u32[144,128]{1,0:T(1,128)}', space=vmem, size = 0x12000, scoped, tag = 'internal scratch']
  %s0 = inlined_call_operand.vmem [shape: f32[16,32], index: 0, kind: input, shape index: {}]
  %s1 = inlined_call_operand.vmem [shape: f32[2,8], index: 1, kind: input, shape index: {}]
  %s2 = inlined_call_operand.vmem [shape: f32[32,128], index: 2, kind: input, shape index: {}]
  %s3 = inlined_call_operand.vmem [shape: f32[1,128], index: 3, kind: input, shape index: {}]
  %s4 = inlined_call_operand.vmem [shape: f32[2,256], index: 4, kind: output, shape index: {}]
  %s5 = sld [smem:[#allocation0]]
  $region26: #{attention_pallas.1} parent=0
    _
  %s7 = ssub.s32 1, %s5
  %s8 = scalar_select 0, %s7, %s5
  // Predicated region
  $region2: #{attention_pallas.1} parent=0 // pred_check
    _
  $region3: #{attention_pallas.1} parent=0 // pred_check_branch
    %10 = sbr.rel (0) target = $region5
  $region4: #{attention_pallas.1} parent=0 // pred_region
    _
  $region5: #{attention_pallas.1} parent=0 // pred_fallthru
    _
  // Predicated region
  $region6: #{attention_pallas.1} parent=0 // pred_check
    _
  $region7: #{attention_pallas.1} parent=0 // pred_check_branch
    %12 = sbr.rel (0) target = $region9
  $region8: #{attention_pallas.1} parent=0 // pred_region
    _
  $region9: #{attention_pallas.1} parent=0 // pred_fallthru
    _
  // Predicated region
  $region10: #{attention_pallas.1} parent=0 // pred_check
    _
  $region11: #{attention_pallas.1} parent=0 // pred_check_branch
    %14 = sbr.rel (0) target = $region13
  $region12: #{attention_pallas.1} parent=0 // pred_region
    _
  $region13: #{attention_pallas.1} parent=0 // pred_fallthru
    _
  // Predicated region
  $region14: #{attention_pallas.1} parent=0 // pred_check
    _
  $region15: #{attention_pallas.1} parent=0 // pred_check_branch
    %16 = sbr.rel (0) target = $region17
  $region16: #{attention_pallas.1} parent=0 // pred_region
    _
  $region17: #{attention_pallas.1} parent=0 // pred_fallthru
    _
  %v17 = vld [vmem:[%s0] sm:$0xff]
  %v18 = vld [vmem:[%s0 + $0x8] sm:$0xff]
  %v19 = vld [vmem:[%s2] sm:$0xff]
  %v20 = vld [vmem:[%s2 + $0x8] sm:$0xff]
  %v21 = vld [vmem:[%s2 + $0x10] sm:$0xff]
  %v22 = vld [vmem:[%s2 + $0x18] sm:$0xff]
  %v23 = vld [vmem:[%s3] sm:$0x1]
  %v24 = vld [vmem:[%s1] sm:$0x3]
  %v26 = vlaneseq
  %v27 = vshrl.u32 %v26, 7
  %v28 = vsub.s32 0, %v27
  %v29 = vrot.slane %v23, %v28
  %vm31 = vcmask 261120
  %v33 = vsel %vm31, %v17, 0
  %v36 = vsel %vm31, %v18, 0
  %38 = vmatprep.subr.mxu0 0.0
  %39 = vmatpush1.msra.mxu0 %v19
  %40 = vmatprep.subr.mxu0 0.0
  %41 = vmatpush1.msra.mxu0 %v20
  %42 = vmatprep.subr.mxu0 0.0
  %43 = vmatpush1.msra.mxu0 %v21
  %44 = vmatprep.subr.mxu0 0.0
  %45 = vmatpush1.msra.mxu0 %v22
  %46 = vmatprep.subr.mxu0 0.0
  %47 = vmatpush1.msra.mxu0 0.0
  %48 = vmatprep.subr.mxu0 0.0
  %49 = vmatpush1.msra.mxu0 0.0
  %50 = vmatprep.subr.mxu0 0.0
  %51 = vmatpush1.msra.mxu0 0.0
  %52 = vmatprep.subr.mxu0 0.0
  %53 = vmatpush1.msra.mxu0 0.0
  %54 = vmatprep.subr.mxu0 0.0
  %55 = vmatpush1.msra.mxu0 0.0
  %56 = vmatprep.subr.mxu0 0.0
  %57 = vmatpush1.msra.mxu0 0.0
  %58 = vmatprep.subr.mxu0 0.0
  %59 = vmatpush1.msra.mxu0 0.0
  %60 = vmatprep.subr.mxu0 0.0
  %61 = vmatpush1.msra.mxu0 0.0
  %62 = vmatprep.subr.mxu0 0.0
  %63 = vmatpush1.msra.mxu0 0.0
  %64 = vmatprep.subr.mxu0 0.0
  %65 = vmatpush1.msra.mxu0 0.0
  %66 = vmatprep.subr.mxu0 0.0
  %67 = vmatpush1.msra.mxu0 0.0
  %68 = vmatprep.subr.mxu0 0.0
  %69 = vmatpush1.msra.mxu0 0.0
  %70 = vmatprep.subr.mxu0 0.0
  %71 = vmatpush1.msra.mxu0 0.0
  %72 = vmatprep.subr.mxu0 0.0
  %73 = vmatpush1.msra.mxu0 0.0
  %74 = vmatprep.subr.mxu0 0.0
  %75 = vmatpush1.msra.mxu0 0.0
  %76 = vmatprep.subr.mxu0 0.0
  %77 = vmatpush1.msra.mxu0 0.0
  %78 = vmatprep.subr.mxu0 0.0
  %79 = vmatpush1.msra.mxu0 0.0
  %80 = vmatprep.subr.mxu0 0.0
  %81 = vmatpush1.msra.mxu0 0.0
  %82 = vmatprep.subr.mxu0 0.0
  %83 = vmatpush1.msra.mxu0 0.0
  %84 = vmatprep.subr.mxu0 0.0
  %85 = vmatpush1.msra.mxu0 0.0
  %86 = vmatprep.subr.mxu0 0.0
  %87 = vmatpush1.msra.mxu0 0.0
  %88 = vmatprep.subr.mxu0 0.0
  %89 = vmatpush1.msra.mxu0 0.0
  %90 = vmatprep.subr.mxu0 0.0
  %91 = vmatpush1.msra.mxu0 0.0
  %92 = vmatprep.subr.mxu0 0.0
  %93 = vmatpush1.msra.mxu0 0.0
  %94 = vmatprep.subr.mxu0 0.0
  %95 = vmatpush1.msra.mxu0 0.0
  %96 = vmatprep.subr.mxu0 0.0
  %97 = vmatpush1.msra.mxu0 0.0
  %98 = vmatprep.subr.mxu0 0.0
  %99 = vmatpush1.msra.mxu0 0.0
  %100 = vmatprep.subr.mxu0 0.0
  %101 = vmatpush1.msra.mxu0 0.0
  %102 = vmatprep.mubr.f32.mxu0 0.0
  %103 = vmatmul.mubr.f32.gmra.mrb[0].mxu0 %v33
  %v104 = vpop.f32.mrb[0].mxu0
  %v105 = vadd.f32 %v29, %v104
  %v106 = vpop.f32.mrb[0].mxu0
  %107 = vmatprep.mubr.f32.mxu0 0.0
  %108 = vmatmul.mubr.f32.gmra.mrb[0].mxu0 %v36
  %v109 = vpop.f32.mrb[0].mxu0
  %v110 = vadd.f32 %v29, %v109
  %v111 = vpop.f32.mrb[0].mxu0
  %112 = vdwg.mxu0
  %v113 = vlaneseq
  %v114 = vshrl.u32 %v113, 7
  %v115 = vsub.s32 0, %v114
  %v116 = vrot.slane %v24, %v115
  %118 = vrot.lane.b32.xlu0 %v105, 96
  %v119 = vpop.permute.xlu0 %118
  %vm120 = vcmask 64512
  %v121 = vsel %vm120, %v105, 0
  %v123 = vsel %vm120, %v119, 0
  %125 = vmatprep.subr.mxu0 0.0
  %126 = vmatpush1.xpose.msra.mxu0 %v123
  %127 = vmatprep.subr.mxu0 0.0
  %128 = vmatpush1.xpose.msra.mxu0 0.0
  %129 = vmatprep.subr.mxu0 0.0
  %130 = vmatpush1.xpose.msra.mxu0 0.0
  %131 = vmatprep.subr.mxu0 0.0
  %132 = vmatpush1.xpose.msra.mxu0 0.0
  %133 = vmatprep.subr.mxu0 0.0
  %134 = vmatpush1.xpose.msra.mxu0 0.0
  %135 = vmatprep.subr.mxu0 0.0
  %136 = vmatpush1.xpose.msra.mxu0 0.0
  %137 = vmatprep.subr.mxu0 0.0
  %138 = vmatpush1.xpose.msra.mxu0 0.0
  %139 = vmatprep.subr.mxu0 0.0
  %140 = vmatpush1.xpose.msra.mxu0 0.0
  %141 = vmatprep.subr.mxu0 0.0
  %142 = vmatpush1.xpose.msra.mxu0 0.0
  %143 = vmatprep.subr.mxu0 0.0
  %144 = vmatpush1.xpose.msra.mxu0 0.0
  %145 = vmatprep.subr.mxu0 0.0
  %146 = vmatpush1.xpose.msra.mxu0 0.0
  %147 = vmatprep.subr.mxu0 0.0
  %148 = vmatpush1.xpose.msra.mxu0 0.0
  %149 = vmatprep.subr.mxu0 0.0
  %150 = vmatpush1.xpose.msra.mxu0 0.0
  %151 = vmatprep.subr.mxu0 0.0
  %152 = vmatpush1.xpose.msra.mxu0 0.0
  %153 = vmatprep.subr.mxu0 0.0
  %154 = vmatpush1.xpose.msra.mxu0 0.0
  %155 = vmatprep.subr.mxu0 0.0
  %156 = vmatpush1.xpose.msra.mxu0 0.0
  %157 = vmatprep.subr.mxu0 0.0
  %158 = vmatpush1.xpose.msra.mxu0 0.0
  %159 = vmatprep.subr.mxu0 0.0
  %160 = vmatpush1.xpose.msra.mxu0 0.0
  %161 = vmatprep.subr.mxu0 0.0
  %162 = vmatpush1.xpose.msra.mxu0 0.0
  %163 = vmatprep.subr.mxu0 0.0
  %164 = vmatpush1.xpose.msra.mxu0 0.0
  %165 = vmatprep.subr.mxu0 0.0
  %166 = vmatpush1.xpose.msra.mxu0 0.0
  %167 = vmatprep.subr.mxu0 0.0
  %168 = vmatpush1.xpose.msra.mxu0 0.0
  %169 = vmatprep.subr.mxu0 0.0
  %170 = vmatpush1.xpose.msra.mxu0 0.0
  %171 = vmatprep.subr.mxu0 0.0
  %172 = vmatpush1.xpose.msra.mxu0 0.0
  %173 = vmatprep.subr.mxu0 0.0
  %174 = vmatpush1.xpose.msra.mxu0 0.0
  %175 = vmatprep.subr.mxu0 0.0
  %176 = vmatpush1.xpose.msra.mxu0 0.0
  %177 = vmatprep.subr.mxu0 0.0
  %178 = vmatpush1.xpose.msra.mxu0 0.0
  %179 = vmatprep.subr.mxu0 0.0
  %180 = vmatpush1.xpose.msra.mxu0 0.0
  %181 = vmatprep.subr.mxu0 0.0
  %182 = vmatpush1.xpose.msra.mxu0 0.0
  %183 = vmatprep.subr.mxu0 0.0
  %184 = vmatpush1.xpose.msra.mxu0 0.0
  %185 = vmatprep.subr.mxu0 0.0
  %186 = vmatpush1.xpose.msra.mxu0 0.0
  %187 = vmatprep.subr.mxu0 0.0
  %188 = vmatpush1.xpose.msra.mxu0 0.0
  %189 = vmatprep.mubr.f32.mxu0 0.0
  %190 = vmatmul.mubr.f32.gmra.mrb[0].mxu0 %v121
  %v191 = vpop.f32.mrb[0].mxu0
  %v192 = vadd.f32 %v116, %v191
  %v193 = vpop.f32.mrb[0].mxu0
  %194 = vdwg.mxu0
  %v195 = vsel %vm120, %v192, -inf
  %196 = vmax.xlane.f32.xlu0 %v195
  %v197 = vpop.xlane.xlu0 %196
  %v198 = vsub.f32 %v192, %v197
  %v199 = vmul.f32 %v198, 1.442695
  %v200 = vpow.pop %v199
  %v201 = vsel %vm120, %v200, 0.0
  %202 = vadd.xlane.f32.xlu0 %v201
  %v203 = vpop.xlane.xlu0 %202
  %v204 = vrcp.pop %v203
  %v205 = vmul.f32 %v200, %v204
  %206 = vrot.lane.b32.xlu0 %v105, 64
  %v207 = vpop.permute.xlu0 %206
  %v210 = vsel %vm120, %v205, 0
  %212 = vmatprep.subr.mxu0 0.0
  %213 = vmatpush1.msra.mxu0 %v207
  %214 = vmatprep.subr.mxu0 0.0
  %215 = vmatpush1.msra.mxu0 0.0
  %216 = vmatprep.subr.mxu0 0.0
  %217 = vmatpush1.msra.mxu0 0.0
  %218 = vmatprep.subr.mxu0 0.0
  %219 = vmatpush1.msra.mxu0 0.0
  %220 = vmatprep.subr.mxu0 0.0
  %221 = vmatpush1.msra.mxu0 0.0
  %222 = vmatprep.subr.mxu0 0.0
  %223 = vmatpush1.msra.mxu0 0.0
  %224 = vmatprep.subr.mxu0 0.0
  %225 = vmatpush1.msra.mxu0 0.0
  %226 = vmatprep.subr.mxu0 0.0
  %227 = vmatpush1.msra.mxu0 0.0
  %228 = vmatprep.subr.mxu0 0.0
  %229 = vmatpush1.msra.mxu0 0.0
  %230 = vmatprep.subr.mxu0 0.0
  %231 = vmatpush1.msra.mxu0 0.0
  %232 = vmatprep.subr.mxu0 0.0
  %233 = vmatpush1.msra.mxu0 0.0
  %234 = vmatprep.subr.mxu0 0.0
  %235 = vmatpush1.msra.mxu0 0.0
  %236 = vmatprep.subr.mxu0 0.0
  %237 = vmatpush1.msra.mxu0 0.0
  %238 = vmatprep.subr.mxu0 0.0
  %239 = vmatpush1.msra.mxu0 0.0
  %240 = vmatprep.subr.mxu0 0.0
  %241 = vmatpush1.msra.mxu0 0.0
  %242 = vmatprep.subr.mxu0 0.0
  %243 = vmatpush1.msra.mxu0 0.0
  %244 = vmatprep.subr.mxu0 0.0
  %245 = vmatpush1.msra.mxu0 0.0
  %246 = vmatprep.subr.mxu0 0.0
  %247 = vmatpush1.msra.mxu0 0.0
  %248 = vmatprep.subr.mxu0 0.0
  %249 = vmatpush1.msra.mxu0 0.0
  %250 = vmatprep.subr.mxu0 0.0
  %251 = vmatpush1.msra.mxu0 0.0
  %252 = vmatprep.subr.mxu0 0.0
  %253 = vmatpush1.msra.mxu0 0.0
  %254 = vmatprep.subr.mxu0 0.0
  %255 = vmatpush1.msra.mxu0 0.0
  %256 = vmatprep.subr.mxu0 0.0
  %257 = vmatpush1.msra.mxu0 0.0
  %258 = vmatprep.subr.mxu0 0.0
  %259 = vmatpush1.msra.mxu0 0.0
  %260 = vmatprep.subr.mxu0 0.0
  %261 = vmatpush1.msra.mxu0 0.0
  %262 = vmatprep.subr.mxu0 0.0
  %263 = vmatpush1.msra.mxu0 0.0
  %264 = vmatprep.subr.mxu0 0.0
  %265 = vmatpush1.msra.mxu0 0.0
  %266 = vmatprep.subr.mxu0 0.0
  %267 = vmatpush1.msra.mxu0 0.0
  %268 = vmatprep.subr.mxu0 0.0
  %269 = vmatpush1.msra.mxu0 0.0
  %270 = vmatprep.subr.mxu0 0.0
  %271 = vmatpush1.msra.mxu0 0.0
  %272 = vmatprep.subr.mxu0 0.0
  %273 = vmatpush1.msra.mxu0 0.0
  %274 = vmatprep.subr.mxu0 0.0
  %275 = vmatpush1.msra.mxu0 0.0
  %276 = vmatprep.mubr.f32.mxu0 0.0
  %277 = vmatmul.mubr.f32.gmra.mrb[0].mxu0 %v210
  %v278 = vpop.f32.mrb[0].mxu0
  %v279 = vadd.f32 0.0, %v278
  %v280 = vpop.f32.mrb[0].mxu0
  %281 = vdwg.mxu0
  %282 = vrot.lane.b32.xlu0 %v105, 120
  %v283 = vpop.permute.xlu0 %282
  %284 = vrot.lane.b32.xlu0 %v105, 88
  %v285 = vpop.permute.xlu0 %284
  %v286 = vsel %vm120, %v283, 0
  %v288 = vsel %vm120, %v285, 0
  %290 = vmatprep.subr.mxu0 0.0
  %291 = vmatpush1.xpose.msra.mxu0 %v288
  %292 = vmatprep.subr.mxu0 0.0
  %293 = vmatpush1.xpose.msra.mxu0 0.0
  %294 = vmatprep.subr.mxu0 0.0
  %295 = vmatpush1.xpose.msra.mxu0 0.0
  %296 = vmatprep.subr.mxu0 0.0
  %297 = vmatpush1.xpose.msra.mxu0 0.0
  %298 = vmatprep.subr.mxu0 0.0
  %299 = vmatpush1.xpose.msra.mxu0 0.0
  %300 = vmatprep.subr.mxu0 0.0
  %301 = vmatpush1.xpose.msra.mxu0 0.0
  %302 = vmatprep.subr.mxu0 0.0
  %303 = vmatpush1.xpose.msra.mxu0 0.0
  %304 = vmatprep.subr.mxu0 0.0
  %305 = vmatpush1.xpose.msra.mxu0 0.0
  %306 = vmatprep.subr.mxu0 0.0
  %307 = vmatpush1.xpose.msra.mxu0 0.0
  %308 = vmatprep.subr.mxu0 0.0
  %309 = vmatpush1.xpose.msra.mxu0 0.0
  %310 = vmatprep.subr.mxu0 0.0
  %311 = vmatpush1.xpose.msra.mxu0 0.0
  %312 = vmatprep.subr.mxu0 0.0
  %313 = vmatpush1.xpose.msra.mxu0 0.0
  %314 = vmatprep.subr.mxu0 0.0
  %315 = vmatpush1.xpose.msra.mxu0 0.0
  %316 = vmatprep.subr.mxu0 0.0
  %317 = vmatpush1.xpose.msra.mxu0 0.0
  %318 = vmatprep.subr.mxu0 0.0
  %319 = vmatpush1.xpose.msra.mxu0 0.0
  %320 = vmatprep.subr.mxu0 0.0
  %321 = vmatpush1.xpose.msra.mxu0 0.0
  %322 = vmatprep.subr.mxu0 0.0
  %323 = vmatpush1.xpose.msra.mxu0 0.0
  %324 = vmatprep.subr.mxu0 0.0
  %325 = vmatpush1.xpose.msra.mxu0 0.0
  %326 = vmatprep.subr.mxu0 0.0
  %327 = vmatpush1.xpose.msra.mxu0 0.0
  %328 = vmatprep.subr.mxu0 0.0
  %329 = vmatpush1.xpose.msra.mxu0 0.0
  %330 = vmatprep.subr.mxu0 0.0
  %331 = vmatpush1.xpose.msra.mxu0 0.0
  %332 = vmatprep.subr.mxu0 0.0
  %333 = vmatpush1.xpose.msra.mxu0 0.0
  %334 = vmatprep.subr.mxu0 0.0
  %335 = vmatpush1.xpose.msra.mxu0 0.0
  %336 = vmatprep.subr.mxu0 0.0
  %337 = vmatpush1.xpose.msra.mxu0 0.0
  %338 = vmatprep.subr.mxu0 0.0
  %339 = vmatpush1.xpose.msra.mxu0 0.0
  %340 = vmatprep.subr.mxu0 0.0
  %341 = vmatpush1.xpose.msra.mxu0 0.0
  %342 = vmatprep.subr.mxu0 0.0
  %343 = vmatpush1.xpose.msra.mxu0 0.0
  %344 = vmatprep.subr.mxu0 0.0
  %345 = vmatpush1.xpose.msra.mxu0 0.0
  %346 = vmatprep.subr.mxu0 0.0
  %347 = vmatpush1.xpose.msra.mxu0 0.0
  %348 = vmatprep.subr.mxu0 0.0
  %349 = vmatpush1.xpose.msra.mxu0 0.0
  %350 = vmatprep.subr.mxu0 0.0
  %351 = vmatpush1.xpose.msra.mxu0 0.0
  %352 = vmatprep.subr.mxu0 0.0
  %353 = vmatpush1.xpose.msra.mxu0 0.0
  %354 = vmatprep.mubr.f32.mxu0 0.0
  %355 = vmatmul.mubr.f32.gmra.mrb[0].mxu0 %v286
  %v356 = vpop.f32.mrb[0].mxu0
  %v357 = vadd.f32 %v116, %v356
  %v358 = vpop.f32.mrb[0].mxu0
  %359 = vdwg.mxu0
  %v360 = vsel %vm120, %v357, -inf
  %361 = vmax.xlane.f32.xlu0 %v360
  %v362 = vpop.xlane.xlu0 %361
  %v363 = vsub.f32 %v357, %v362
  %v364 = vmul.f32 %v363, 1.442695
  %v365 = vpow.pop %v364
  %v366 = vsel %vm120, %v365, 0.0
  %367 = vadd.xlane.f32.xlu0 %v366
  %v368 = vpop.xlane.xlu0 %367
  %v369 = vrcp.pop %v368
  %v370 = vmul.f32 %v365, %v369
  %371 = vrot.lane.b32.xlu0 %v105, 56
  %v372 = vpop.permute.xlu0 %371
  %v375 = vsel %vm120, %v370, 0
  %377 = vmatprep.subr.mxu0 0.0
  %378 = vmatpush1.msra.mxu0 %v372
  %379 = vmatprep.subr.mxu0 0.0
  %380 = vmatpush1.msra.mxu0 0.0
  %381 = vmatprep.subr.mxu0 0.0
  %382 = vmatpush1.msra.mxu0 0.0
  %383 = vmatprep.subr.mxu0 0.0
  %384 = vmatpush1.msra.mxu0 0.0
  %385 = vmatprep.subr.mxu0 0.0
  %386 = vmatpush1.msra.mxu0 0.0
  %387 = vmatprep.subr.mxu0 0.0
  %388 = vmatpush1.msra.mxu0 0.0
  %389 = vmatprep.subr.mxu0 0.0
  %390 = vmatpush1.msra.mxu0 0.0
  %391 = vmatprep.subr.mxu0 0.0
  %392 = vmatpush1.msra.mxu0 0.0
  %393 = vmatprep.subr.mxu0 0.0
  %394 = vmatpush1.msra.mxu0 0.0
  %395 = vmatprep.subr.mxu0 0.0
  %396 = vmatpush1.msra.mxu0 0.0
  %397 = vmatprep.subr.mxu0 0.0
  %398 = vmatpush1.msra.mxu0 0.0
  %399 = vmatprep.subr.mxu0 0.0
  %400 = vmatpush1.msra.mxu0 0.0
  %401 = vmatprep.subr.mxu0 0.0
  %402 = vmatpush1.msra.mxu0 0.0
  %403 = vmatprep.subr.mxu0 0.0
  %404 = vmatpush1.msra.mxu0 0.0
  %405 = vmatprep.subr.mxu0 0.0
  %406 = vmatpush1.msra.mxu0 0.0
  %407 = vmatprep.subr.mxu0 0.0
  %408 = vmatpush1.msra.mxu0 0.0
  %409 = vmatprep.subr.mxu0 0.0
  %410 = vmatpush1.msra.mxu0 0.0
  %411 = vmatprep.subr.mxu0 0.0
  %412 = vmatpush1.msra.mxu0 0.0
  %413 = vmatprep.subr.mxu0 0.0
  %414 = vmatpush1.msra.mxu0 0.0
  %415 = vmatprep.subr.mxu0 0.0
  %416 = vmatpush1.msra.mxu0 0.0
  %417 = vmatprep.subr.mxu0 0.0
  %418 = vmatpush1.msra.mxu0 0.0
  %419 = vmatprep.subr.mxu0 0.0
  %420 = vmatpush1.msra.mxu0 0.0
  %421 = vmatprep.subr.mxu0 0.0
  %422 = vmatpush1.msra.mxu0 0.0
  %423 = vmatprep.subr.mxu0 0.0
  %424 = vmatpush1.msra.mxu0 0.0
  %425 = vmatprep.subr.mxu0 0.0
  %426 = vmatpush1.msra.mxu0 0.0
  %427 = vmatprep.subr.mxu0 0.0
  %428 = vmatpush1.msra.mxu0 0.0
  %429 = vmatprep.subr.mxu0 0.0
  %430 = vmatpush1.msra.mxu0 0.0
  %431 = vmatprep.subr.mxu0 0.0
  %432 = vmatpush1.msra.mxu0 0.0
  %433 = vmatprep.subr.mxu0 0.0
  %434 = vmatpush1.msra.mxu0 0.0
  %435 = vmatprep.subr.mxu0 0.0
  %436 = vmatpush1.msra.mxu0 0.0
  %437 = vmatprep.subr.mxu0 0.0
  %438 = vmatpush1.msra.mxu0 0.0
  %439 = vmatprep.subr.mxu0 0.0
  %440 = vmatpush1.msra.mxu0 0.0
  %441 = vmatprep.mubr.f32.mxu0 0.0
  %442 = vmatmul.mubr.f32.gmra.mrb[0].mxu0 %v375
  %v443 = vpop.f32.mrb[0].mxu0
  %v444 = vadd.f32 0.0, %v443
  %v445 = vpop.f32.mrb[0].mxu0
  %446 = vdwg.mxu0
  %448 = vrot.lane.b32.xlu0 %v20, 32
  %v449 = vpop.permute.xlu0 %448
  %v452 = vsel %vm120, %v444, 0
  %454 = vmatprep.subr.mxu0 0.0
  %455 = vmatpush1.msra.mxu0 %v449
  %456 = vmatprep.subr.mxu0 0.0
  %457 = vmatpush1.msra.mxu0 0.0
  %458 = vmatprep.subr.mxu0 0.0
  %459 = vmatpush1.msra.mxu0 0.0
  %460 = vmatprep.subr.mxu0 0.0
  %461 = vmatpush1.msra.mxu0 0.0
  %462 = vmatprep.subr.mxu0 0.0
  %463 = vmatpush1.msra.mxu0 0.0
  %464 = vmatprep.subr.mxu0 0.0
  %465 = vmatpush1.msra.mxu0 0.0
  %466 = vmatprep.subr.mxu0 0.0
  %467 = vmatpush1.msra.mxu0 0.0
  %468 = vmatprep.subr.mxu0 0.0
  %469 = vmatpush1.msra.mxu0 0.0
  %470 = vmatprep.subr.mxu0 0.0
  %471 = vmatpush1.msra.mxu0 0.0
  %472 = vmatprep.subr.mxu0 0.0
  %473 = vmatpush1.msra.mxu0 0.0
  %474 = vmatprep.subr.mxu0 0.0
  %475 = vmatpush1.msra.mxu0 0.0
  %476 = vmatprep.subr.mxu0 0.0
  %477 = vmatpush1.msra.mxu0 0.0
  %478 = vmatprep.subr.mxu0 0.0
  %479 = vmatpush1.msra.mxu0 0.0
  %480 = vmatprep.subr.mxu0 0.0
  %481 = vmatpush1.msra.mxu0 0.0
  %482 = vmatprep.subr.mxu0 0.0
  %483 = vmatpush1.msra.mxu0 0.0
  %484 = vmatprep.subr.mxu0 0.0
  %485 = vmatpush1.msra.mxu0 0.0
  %486 = vmatprep.subr.mxu0 0.0
  %487 = vmatpush1.msra.mxu0 0.0
  %488 = vmatprep.subr.mxu0 0.0
  %489 = vmatpush1.msra.mxu0 0.0
  %490 = vmatprep.subr.mxu0 0.0
  %491 = vmatpush1.msra.mxu0 0.0
  %492 = vmatprep.subr.mxu0 0.0
  %493 = vmatpush1.msra.mxu0 0.0
  %494 = vmatprep.subr.mxu0 0.0
  %495 = vmatpush1.msra.mxu0 0.0
  %496 = vmatprep.subr.mxu0 0.0
  %497 = vmatpush1.msra.mxu0 0.0
  %498 = vmatprep.subr.mxu0 0.0
  %499 = vmatpush1.msra.mxu0 0.0
  %500 = vmatprep.subr.mxu0 0.0
  %501 = vmatpush1.msra.mxu0 0.0
  %502 = vmatprep.subr.mxu0 0.0
  %503 = vmatpush1.msra.mxu0 0.0
  %504 = vmatprep.subr.mxu0 0.0
  %505 = vmatpush1.msra.mxu0 0.0
  %506 = vmatprep.subr.mxu0 0.0
  %507 = vmatpush1.msra.mxu0 0.0
  %508 = vmatprep.subr.mxu0 0.0
  %509 = vmatpush1.msra.mxu0 0.0
  %510 = vmatprep.subr.mxu0 0.0
  %511 = vmatpush1.msra.mxu0 0.0
  %512 = vmatprep.subr.mxu0 0.0
  %513 = vmatpush1.msra.mxu0 0.0
  %514 = vmatprep.subr.mxu0 0.0
  %515 = vmatpush1.msra.mxu0 0.0
  %516 = vmatprep.subr.mxu0 0.0
  %517 = vmatpush1.msra.mxu0 0.0
  %518 = vmatprep.mubr.f32.mxu0 0.0
  %519 = vmatmul.mubr.f32.gmra.mrb[0].mxu0 %v452
  %v520 = vpop.f32.mrb[0].mxu0
  %v521 = vadd.f32 0.0, %v520
  %v522 = vpop.f32.mrb[0].mxu0
  %523 = vdwg.mxu0
  %525 = vrot.lane.b32.xlu0 %v19, 32
  %v526 = vpop.permute.xlu0 %525
  %v529 = vsel %vm120, %v279, 0
  %531 = vmatprep.subr.mxu0 0.0
  %532 = vmatpush1.msra.mxu0 %v526
  %533 = vmatprep.subr.mxu0 0.0
  %534 = vmatpush1.msra.mxu0 0.0
  %535 = vmatprep.subr.mxu0 0.0
  %536 = vmatpush1.msra.mxu0 0.0
  %537 = vmatprep.subr.mxu0 0.0
  %538 = vmatpush1.msra.mxu0 0.0
  %539 = vmatprep.subr.mxu0 0.0
  %540 = vmatpush1.msra.mxu0 0.0
  %541 = vmatprep.subr.mxu0 0.0
  %542 = vmatpush1.msra.mxu0 0.0
  %543 = vmatprep.subr.mxu0 0.0
  %544 = vmatpush1.msra.mxu0 0.0
  %545 = vmatprep.subr.mxu0 0.0
  %546 = vmatpush1.msra.mxu0 0.0
  %547 = vmatprep.subr.mxu0 0.0
  %548 = vmatpush1.msra.mxu0 0.0
  %549 = vmatprep.subr.mxu0 0.0
  %550 = vmatpush1.msra.mxu0 0.0
  %551 = vmatprep.subr.mxu0 0.0
  %552 = vmatpush1.msra.mxu0 0.0
  %553 = vmatprep.subr.mxu0 0.0
  %554 = vmatpush1.msra.mxu0 0.0
  %555 = vmatprep.subr.mxu0 0.0
  %556 = vmatpush1.msra.mxu0 0.0
  %557 = vmatprep.subr.mxu0 0.0
  %558 = vmatpush1.msra.mxu0 0.0
  %559 = vmatprep.subr.mxu0 0.0
  %560 = vmatpush1.msra.mxu0 0.0
  %561 = vmatprep.subr.mxu0 0.0
  %562 = vmatpush1.msra.mxu0 0.0
  %563 = vmatprep.subr.mxu0 0.0
  %564 = vmatpush1.msra.mxu0 0.0
  %565 = vmatprep.subr.mxu0 0.0
  %566 = vmatpush1.msra.mxu0 0.0
  %567 = vmatprep.subr.mxu0 0.0
  %568 = vmatpush1.msra.mxu0 0.0
  %569 = vmatprep.subr.mxu0 0.0
  %570 = vmatpush1.msra.mxu0 0.0
  %571 = vmatprep.subr.mxu0 0.0
  %572 = vmatpush1.msra.mxu0 0.0
  %573 = vmatprep.subr.mxu0 0.0
  %574 = vmatpush1.msra.mxu0 0.0
  %575 = vmatprep.subr.mxu0 0.0
  %576 = vmatpush1.msra.mxu0 0.0
  %577 = vmatprep.subr.mxu0 0.0
  %578 = vmatpush1.msra.mxu0 0.0
  %579 = vmatprep.subr.mxu0 0.0
  %580 = vmatpush1.msra.mxu0 0.0
  %581 = vmatprep.subr.mxu0 0.0
  %582 = vmatpush1.msra.mxu0 0.0
  %583 = vmatprep.subr.mxu0 0.0
  %584 = vmatpush1.msra.mxu0 0.0
  %585 = vmatprep.subr.mxu0 0.0
  %586 = vmatpush1.msra.mxu0 0.0
  %587 = vmatprep.subr.mxu0 0.0
  %588 = vmatpush1.msra.mxu0 0.0
  %589 = vmatprep.subr.mxu0 0.0
  %590 = vmatpush1.msra.mxu0 0.0
  %591 = vmatprep.subr.mxu0 0.0
  %592 = vmatpush1.msra.mxu0 0.0
  %593 = vmatprep.subr.mxu0 0.0
  %594 = vmatpush1.msra.mxu0 0.0
  %595 = vmatprep.mubr.f32.mxu0 0.0
  %596 = vmatmul.mubr.f32.gmra.mrb[0].mxu0 %v529
  %v597 = vpop.f32.mrb[0].mxu0
  %v598 = vadd.f32 %v521, %v597
  %v599 = vpop.f32.mrb[0].mxu0
  %600 = vdwg.mxu0
  %601 = vrot.lane.b32.xlu0 %v105, 112
  %v602 = vpop.permute.xlu0 %601
  %603 = vrot.lane.b32.xlu0 %v105, 80
  %v604 = vpop.permute.xlu0 %603
  %v605 = vsel %vm120, %v602, 0
  %v607 = vsel %vm120, %v604, 0
  %609 = vmatprep.subr.mxu0 0.0
  %610 = vmatpush1.xpose.msra.mxu0 %v607
  %611 = vmatprep.subr.mxu0 0.0
  %612 = vmatpush1.xpose.msra.mxu0 0.0
  %613 = vmatprep.subr.mxu0 0.0
  %614 = vmatpush1.xpose.msra.mxu0 0.0
  %615 = vmatprep.subr.mxu0 0.0
  %616 = vmatpush1.xpose.msra.mxu0 0.0
  %617 = vmatprep.subr.mxu0 0.0
  %618 = vmatpush1.xpose.msra.mxu0 0.0
  %619 = vmatprep.subr.mxu0 0.0
  %620 = vmatpush1.xpose.msra.mxu0 0.0
  %621 = vmatprep.subr.mxu0 0.0
  %622 = vmatpush1.xpose.msra.mxu0 0.0
  %623 = vmatprep.subr.mxu0 0.0
  %624 = vmatpush1.xpose.msra.mxu0 0.0
  %625 = vmatprep.subr.mxu0 0.0
  %626 = vmatpush1.xpose.msra.mxu0 0.0
  %627 = vmatprep.subr.mxu0 0.0
  %628 = vmatpush1.xpose.msra.mxu0 0.0
  %629 = vmatprep.subr.mxu0 0.0
  %630 = vmatpush1.xpose.msra.mxu0 0.0
  %631 = vmatprep.subr.mxu0 0.0
  %632 = vmatpush1.xpose.msra.mxu0 0.0
  %633 = vmatprep.subr.mxu0 0.0
  %634 = vmatpush1.xpose.msra.mxu0 0.0
  %635 = vmatprep.subr.mxu0 0.0
  %636 = vmatpush1.xpose.msra.mxu0 0.0
  %637 = vmatprep.subr.mxu0 0.0
  %638 = vmatpush1.xpose.msra.mxu0 0.0
  %639 = vmatprep.subr.mxu0 0.0
  %640 = vmatpush1.xpose.msra.mxu0 0.0
  %641 = vmatprep.subr.mxu0 0.0
  %642 = vmatpush1.xpose.msra.mxu0 0.0
  %643 = vmatprep.subr.mxu0 0.0
  %644 = vmatpush1.xpose.msra.mxu0 0.0
  %645 = vmatprep.subr.mxu0 0.0
  %646 = vmatpush1.xpose.msra.mxu0 0.0
  %647 = vmatprep.subr.mxu0 0.0
  %648 = vmatpush1.xpose.msra.mxu0 0.0
  %649 = vmatprep.subr.mxu0 0.0
  %650 = vmatpush1.xpose.msra.mxu0 0.0
  %651 = vmatprep.subr.mxu0 0.0
  %652 = vmatpush1.xpose.msra.mxu0 0.0
  %653 = vmatprep.subr.mxu0 0.0
  %654 = vmatpush1.xpose.msra.mxu0 0.0
  %655 = vmatprep.subr.mxu0 0.0
  %656 = vmatpush1.xpose.msra.mxu0 0.0
  %657 = vmatprep.subr.mxu0 0.0
  %658 = vmatpush1.xpose.msra.mxu0 0.0
  %659 = vmatprep.subr.mxu0 0.0
  %660 = vmatpush1.xpose.msra.mxu0 0.0
  %661 = vmatprep.subr.mxu0 0.0
  %662 = vmatpush1.xpose.msra.mxu0 0.0
  %663 = vmatprep.subr.mxu0 0.0
  %664 = vmatpush1.xpose.msra.mxu0 0.0
  %665 = vmatprep.subr.mxu0 0.0
  %666 = vmatpush1.xpose.msra.mxu0 0.0
  %667 = vmatprep.subr.mxu0 0.0
  %668 = vmatpush1.xpose.msra.mxu0 0.0
  %669 = vmatprep.subr.mxu0 0.0
  %670 = vmatpush1.xpose.msra.mxu0 0.0
  %671 = vmatprep.subr.mxu0 0.0
  %672 = vmatpush1.xpose.msra.mxu0 0.0
  %673 = vmatprep.mubr.f32.mxu0 0.0
  %674 = vmatmul.mubr.f32.gmra.mrb[0].mxu0 %v605
  %v675 = vpop.f32.mrb[0].mxu0
  %v676 = vadd.f32 %v116, %v675
  %v677 = vpop.f32.mrb[0].mxu0
  %678 = vdwg.mxu0
  %v679 = vsel %vm120, %v676, -inf
  %680 = vmax.xlane.f32.xlu0 %v679
  %v681 = vpop.xlane.xlu0 %680
  %v682 = vsub.f32 %v676, %v681
  %v683 = vmul.f32 %v682, 1.442695
  %v684 = vpow.pop %v683
  %v685 = vsel %vm120, %v684, 0.0
  %686 = vadd.xlane.f32.xlu0 %v685
  %v687 = vpop.xlane.xlu0 %686
  %v688 = vrcp.pop %v687
  %v689 = vmul.f32 %v684, %v688
  %690 = vrot.lane.b32.xlu0 %v105, 48
  %v691 = vpop.permute.xlu0 %690
  %v694 = vsel %vm120, %v689, 0
  %696 = vmatprep.subr.mxu0 0.0
  %697 = vmatpush1.msra.mxu0 %v691
  %698 = vmatprep.subr.mxu0 0.0
  %699 = vmatpush1.msra.mxu0 0.0
  %700 = vmatprep.subr.mxu0 0.0
  %701 = vmatpush1.msra.mxu0 0.0
  %702 = vmatprep.subr.mxu0 0.0
  %703 = vmatpush1.msra.mxu0 0.0
  %704 = vmatprep.subr.mxu0 0.0
  %705 = vmatpush1.msra.mxu0 0.0
  %706 = vmatprep.subr.mxu0 0.0
  %707 = vmatpush1.msra.mxu0 0.0
  %708 = vmatprep.subr.mxu0 0.0
  %709 = vmatpush1.msra.mxu0 0.0
  %710 = vmatprep.subr.mxu0 0.0
  %711 = vmatpush1.msra.mxu0 0.0
  %712 = vmatprep.subr.mxu0 0.0
  %713 = vmatpush1.msra.mxu0 0.0
  %714 = vmatprep.subr.mxu0 0.0
  %715 = vmatpush1.msra.mxu0 0.0
  %716 = vmatprep.subr.mxu0 0.0
  %717 = vmatpush1.msra.mxu0 0.0
  %718 = vmatprep.subr.mxu0 0.0
  %719 = vmatpush1.msra.mxu0 0.0
  %720 = vmatprep.subr.mxu0 0.0
  %721 = vmatpush1.msra.mxu0 0.0
  %722 = vmatprep.subr.mxu0 0.0
  %723 = vmatpush1.msra.mxu0 0.0
  %724 = vmatprep.subr.mxu0 0.0
  %725 = vmatpush1.msra.mxu0 0.0
  %726 = vmatprep.subr.mxu0 0.0
  %727 = vmatpush1.msra.mxu0 0.0
  %728 = vmatprep.subr.mxu0 0.0
  %729 = vmatpush1.msra.mxu0 0.0
  %730 = vmatprep.subr.mxu0 0.0
  %731 = vmatpush1.msra.mxu0 0.0
  %732 = vmatprep.subr.mxu0 0.0
  %733 = vmatpush1.msra.mxu0 0.0
  %734 = vmatprep.subr.mxu0 0.0
  %735 = vmatpush1.msra.mxu0 0.0
  %736 = vmatprep.subr.mxu0 0.0
  %737 = vmatpush1.msra.mxu0 0.0
  %738 = vmatprep.subr.mxu0 0.0
  %739 = vmatpush1.msra.mxu0 0.0
  %740 = vmatprep.subr.mxu0 0.0
  %741 = vmatpush1.msra.mxu0 0.0
  %742 = vmatprep.subr.mxu0 0.0
  %743 = vmatpush1.msra.mxu0 0.0
  %744 = vmatprep.subr.mxu0 0.0
  %745 = vmatpush1.msra.mxu0 0.0
  %746 = vmatprep.subr.mxu0 0.0
  %747 = vmatpush1.msra.mxu0 0.0
  %748 = vmatprep.subr.mxu0 0.0
  %749 = vmatpush1.msra.mxu0 0.0
  %750 = vmatprep.subr.mxu0 0.0
  %751 = vmatpush1.msra.mxu0 0.0
  %752 = vmatprep.subr.mxu0 0.0
  %753 = vmatpush1.msra.mxu0 0.0
  %754 = vmatprep.subr.mxu0 0.0
  %755 = vmatpush1.msra.mxu0 0.0
  %756 = vmatprep.subr.mxu0 0.0
  %757 = vmatpush1.msra.mxu0 0.0
  %758 = vmatprep.subr.mxu0 0.0
  %759 = vmatpush1.msra.mxu0 0.0
  %760 = vmatprep.mubr.f32.mxu0 0.0
  %761 = vmatmul.mubr.f32.gmra.mrb[0].mxu0 %v694
  %v762 = vpop.f32.mrb[0].mxu0
  %v763 = vadd.f32 0.0, %v762
  %v764 = vpop.f32.mrb[0].mxu0
  %765 = vdwg.mxu0
  %767 = vrot.lane.b32.xlu0 %v21, 32
  %v768 = vpop.permute.xlu0 %767
  %v771 = vsel %vm120, %v763, 0
  %773 = vmatprep.subr.mxu0 0.0
  %774 = vmatpush1.msra.mxu0 %v768
  %775 = vmatprep.subr.mxu0 0.0
  %776 = vmatpush1.msra.mxu0 0.0
  %777 = vmatprep.subr.mxu0 0.0
  %778 = vmatpush1.msra.mxu0 0.0
  %779 = vmatprep.subr.mxu0 0.0
  %780 = vmatpush1.msra.mxu0 0.0
  %781 = vmatprep.subr.mxu0 0.0
  %782 = vmatpush1.msra.mxu0 0.0
  %783 = vmatprep.subr.mxu0 0.0
  %784 = vmatpush1.msra.mxu0 0.0
  %785 = vmatprep.subr.mxu0 0.0
  %786 = vmatpush1.msra.mxu0 0.0
  %787 = vmatprep.subr.mxu0 0.0
  %788 = vmatpush1.msra.mxu0 0.0
  %789 = vmatprep.subr.mxu0 0.0
  %790 = vmatpush1.msra.mxu0 0.0
  %791 = vmatprep.subr.mxu0 0.0
  %792 = vmatpush1.msra.mxu0 0.0
  %793 = vmatprep.subr.mxu0 0.0
  %794 = vmatpush1.msra.mxu0 0.0
  %795 = vmatprep.subr.mxu0 0.0
  %796 = vmatpush1.msra.mxu0 0.0
  %797 = vmatprep.subr.mxu0 0.0
  %798 = vmatpush1.msra.mxu0 0.0
  %799 = vmatprep.subr.mxu0 0.0
  %800 = vmatpush1.msra.mxu0 0.0
  %801 = vmatprep.subr.mxu0 0.0
  %802 = vmatpush1.msra.mxu0 0.0
  %803 = vmatprep.subr.mxu0 0.0
  %804 = vmatpush1.msra.mxu0 0.0
  %805 = vmatprep.subr.mxu0 0.0
  %806 = vmatpush1.msra.mxu0 0.0
  %807 = vmatprep.subr.mxu0 0.0
  %808 = vmatpush1.msra.mxu0 0.0
  %809 = vmatprep.subr.mxu0 0.0
  %810 = vmatpush1.msra.mxu0 0.0
  %811 = vmatprep.subr.mxu0 0.0
  %812 = vmatpush1.msra.mxu0 0.0
  %813 = vmatprep.subr.mxu0 0.0
  %814 = vmatpush1.msra.mxu0 0.0
  %815 = vmatprep.subr.mxu0 0.0
  %816 = vmatpush1.msra.mxu0 0.0
  %817 = vmatprep.subr.mxu0 0.0
  %818 = vmatpush1.msra.mxu0 0.0
  %819 = vmatprep.subr.mxu0 0.0
  %820 = vmatpush1.msra.mxu0 0.0
  %821 = vmatprep.subr.mxu0 0.0
  %822 = vmatpush1.msra.mxu0 0.0
  %823 = vmatprep.subr.mxu0 0.0
  %824 = vmatpush1.msra.mxu0 0.0
  %825 = vmatprep.subr.mxu0 0.0
  %826 = vmatpush1.msra.mxu0 0.0
  %827 = vmatprep.subr.mxu0 0.0
  %828 = vmatpush1.msra.mxu0 0.0
  %829 = vmatprep.subr.mxu0 0.0
  %830 = vmatpush1.msra.mxu0 0.0
  %831 = vmatprep.subr.mxu0 0.0
  %832 = vmatpush1.msra.mxu0 0.0
  %833 = vmatprep.subr.mxu0 0.0
  %834 = vmatpush1.msra.mxu0 0.0
  %835 = vmatprep.subr.mxu0 0.0
  %836 = vmatpush1.msra.mxu0 0.0
  %837 = vmatprep.mubr.f32.mxu0 0.0
  %838 = vmatmul.mubr.f32.gmra.mrb[0].mxu0 %v771
  %v839 = vpop.f32.mrb[0].mxu0
  %v840 = vadd.f32 0.0, %v839
  %v841 = vpop.f32.mrb[0].mxu0
  %842 = vdwg.mxu0
  %v843 = vadd.f32 %v598, %v840
  %844 = vrot.lane.b32.xlu0 %v105, 104
  %v845 = vpop.permute.xlu0 %844
  %846 = vrot.lane.b32.xlu0 %v105, 72
  %v847 = vpop.permute.xlu0 %846
  %v848 = vsel %vm120, %v845, 0
  %v850 = vsel %vm120, %v847, 0
  %852 = vmatprep.subr.mxu0 0.0
  %853 = vmatpush1.xpose.msra.mxu0 %v850
  %854 = vmatprep.subr.mxu0 0.0
  %855 = vmatpush1.xpose.msra.mxu0 0.0
  %856 = vmatprep.subr.mxu0 0.0
  %857 = vmatpush1.xpose.msra.mxu0 0.0
  %858 = vmatprep.subr.mxu0 0.0
  %859 = vmatpush1.xpose.msra.mxu0 0.0
  %860 = vmatprep.subr.mxu0 0.0
  %861 = vmatpush1.xpose.msra.mxu0 0.0
  %862 = vmatprep.subr.mxu0 0.0
  %863 = vmatpush1.xpose.msra.mxu0 0.0
  %864 = vmatprep.subr.mxu0 0.0
  %865 = vmatpush1.xpose.msra.mxu0 0.0
  %866 = vmatprep.subr.mxu0 0.0
  %867 = vmatpush1.xpose.msra.mxu0 0.0
  %868 = vmatprep.subr.mxu0 0.0
  %869 = vmatpush1.xpose.msra.mxu0 0.0
  %870 = vmatprep.subr.mxu0 0.0
  %871 = vmatpush1.xpose.msra.mxu0 0.0
  %872 = vmatprep.subr.mxu0 0.0
  %873 = vmatpush1.xpose.msra.mxu0 0.0
  %874 = vmatprep.subr.mxu0 0.0
  %875 = vmatpush1.xpose.msra.mxu0 0.0
  %876 = vmatprep.subr.mxu0 0.0
  %877 = vmatpush1.xpose.msra.mxu0 0.0
  %878 = vmatprep.subr.mxu0 0.0
  %879 = vmatpush1.xpose.msra.mxu0 0.0
  %880 = vmatprep.subr.mxu0 0.0
  %881 = vmatpush1.xpose.msra.mxu0 0.0
  %882 = vmatprep.subr.mxu0 0.0
  %883 = vmatpush1.xpose.msra.mxu0 0.0
  %884 = vmatprep.subr.mxu0 0.0
  %885 = vmatpush1.xpose.msra.mxu0 0.0
  %886 = vmatprep.subr.mxu0 0.0
  %887 = vmatpush1.xpose.msra.mxu0 0.0
  %888 = vmatprep.subr.mxu0 0.0
  %889 = vmatpush1.xpose.msra.mxu0 0.0
  %890 = vmatprep.subr.mxu0 0.0
  %891 = vmatpush1.xpose.msra.mxu0 0.0
  %892 = vmatprep.subr.mxu0 0.0
  %893 = vmatpush1.xpose.msra.mxu0 0.0
  %894 = vmatprep.subr.mxu0 0.0
  %895 = vmatpush1.xpose.msra.mxu0 0.0
  %896 = vmatprep.subr.mxu0 0.0
  %897 = vmatpush1.xpose.msra.mxu0 0.0
  %898 = vmatprep.subr.mxu0 0.0
  %899 = vmatpush1.xpose.msra.mxu0 0.0
  %900 = vmatprep.subr.mxu0 0.0
  %901 = vmatpush1.xpose.msra.mxu0 0.0
  %902 = vmatprep.subr.mxu0 0.0
  %903 = vmatpush1.xpose.msra.mxu0 0.0
  %904 = vmatprep.subr.mxu0 0.0
  %905 = vmatpush1.xpose.msra.mxu0 0.0
  %906 = vmatprep.subr.mxu0 0.0
  %907 = vmatpush1.xpose.msra.mxu0 0.0
  %908 = vmatprep.subr.mxu0 0.0
  %909 = vmatpush1.xpose.msra.mxu0 0.0
  %910 = vmatprep.subr.mxu0 0.0
  %911 = vmatpush1.xpose.msra.mxu0 0.0
  %912 = vmatprep.subr.mxu0 0.0
  %913 = vmatpush1.xpose.msra.mxu0 0.0
  %914 = vmatprep.subr.mxu0 0.0
  %915 = vmatpush1.xpose.msra.mxu0 0.0
  %916 = vmatprep.mubr.f32.mxu0 0.0
  %917 = vmatmul.mubr.f32.gmra.mrb[0].mxu0 %v848
  %v918 = vpop.f32.mrb[0].mxu0
  %v919 = vadd.f32 %v116, %v918
  %v920 = vpop.f32.mrb[0].mxu0
  %921 = vdwg.mxu0
  %v922 = vsel %vm120, %v919, -inf
  %923 = vmax.xlane.f32.xlu0 %v922
  %v924 = vpop.xlane.xlu0 %923
  %v925 = vsub.f32 %v919, %v924
  %v926 = vmul.f32 %v925, 1.442695
  %v927 = vpow.pop %v926
  %v928 = vsel %vm120, %v927, 0.0
  %929 = vadd.xlane.f32.xlu0 %v928
  %v930 = vpop.xlane.xlu0 %929
  %v931 = vrcp.pop %v930
  %v932 = vmul.f32 %v927, %v931
  %933 = vrot.lane.b32.xlu0 %v105, 40
  %v934 = vpop.permute.xlu0 %933
  %v937 = vsel %vm120, %v932, 0
  %939 = vmatprep.subr.mxu0 0.0
  %940 = vmatpush1.msra.mxu0 %v934
  %941 = vmatprep.subr.mxu0 0.0
  %942 = vmatpush1.msra.mxu0 0.0
  %943 = vmatprep.subr.mxu0 0.0
  %944 = vmatpush1.msra.mxu0 0.0
  %945 = vmatprep.subr.mxu0 0.0
  %946 = vmatpush1.msra.mxu0 0.0
  %947 = vmatprep.subr.mxu0 0.0
  %948 = vmatpush1.msra.mxu0 0.0
  %949 = vmatprep.subr.mxu0 0.0
  %950 = vmatpush1.msra.mxu0 0.0
  %951 = vmatprep.subr.mxu0 0.0
  %952 = vmatpush1.msra.mxu0 0.0
  %953 = vmatprep.subr.mxu0 0.0
  %954 = vmatpush1.msra.mxu0 0.0
  %955 = vmatprep.subr.mxu0 0.0
  %956 = vmatpush1.msra.mxu0 0.0
  %957 = vmatprep.subr.mxu0 0.0
  %958 = vmatpush1.msra.mxu0 0.0
  %959 = vmatprep.subr.mxu0 0.0
  %960 = vmatpush1.msra.mxu0 0.0
  %961 = vmatprep.subr.mxu0 0.0
  %962 = vmatpush1.msra.mxu0 0.0
  %963 = vmatprep.subr.mxu0 0.0
  %964 = vmatpush1.msra.mxu0 0.0
  %965 = vmatprep.subr.mxu0 0.0
  %966 = vmatpush1.msra.mxu0 0.0
  %967 = vmatprep.subr.mxu0 0.0
  %968 = vmatpush1.msra.mxu0 0.0
  %969 = vmatprep.subr.mxu0 0.0
  %970 = vmatpush1.msra.mxu0 0.0
  %971 = vmatprep.subr.mxu0 0.0
  %972 = vmatpush1.msra.mxu0 0.0
  %973 = vmatprep.subr.mxu0 0.0
  %974 = vmatpush1.msra.mxu0 0.0
  %975 = vmatprep.subr.mxu0 0.0
  %976 = vmatpush1.msra.mxu0 0.0
  %977 = vmatprep.subr.mxu0 0.0
  %978 = vmatpush1.msra.mxu0 0.0
  %979 = vmatprep.subr.mxu0 0.0
  %980 = vmatpush1.msra.mxu0 0.0
  %981 = vmatprep.subr.mxu0 0.0
  %982 = vmatpush1.msra.mxu0 0.0
  %983 = vmatprep.subr.mxu0 0.0
  %984 = vmatpush1.msra.mxu0 0.0
  %985 = vmatprep.subr.mxu0 0.0
  %986 = vmatpush1.msra.mxu0 0.0
  %987 = vmatprep.subr.mxu0 0.0
  %988 = vmatpush1.msra.mxu0 0.0
  %989 = vmatprep.subr.mxu0 0.0
  %990 = vmatpush1.msra.mxu0 0.0
  %991 = vmatprep.subr.mxu0 0.0
  %992 = vmatpush1.msra.mxu0 0.0
  %993 = vmatprep.subr.mxu0 0.0
  %994 = vmatpush1.msra.mxu0 0.0
  %995 = vmatprep.subr.mxu0 0.0
  %996 = vmatpush1.msra.mxu0 0.0
  %997 = vmatprep.subr.mxu0 0.0
  %998 = vmatpush1.msra.mxu0 0.0
  %999 = vmatprep.subr.mxu0 0.0
  %1000 = vmatpush1.msra.mxu0 0.0
  %1001 = vmatprep.subr.mxu0 0.0
  %1002 = vmatpush1.msra.mxu0 0.0
  %1003 = vmatprep.mubr.f32.mxu0 0.0
  %1004 = vmatmul.mubr.f32.gmra.mrb[0].mxu0 %v937
  %v1005 = vpop.f32.mrb[0].mxu0
  %v1006 = vadd.f32 0.0, %v1005
  %v1007 = vpop.f32.mrb[0].mxu0
  %1008 = vdwg.mxu0
  %1010 = vrot.lane.b32.xlu0 %v22, 32
  %v1011 = vpop.permute.xlu0 %1010
  %v1014 = vsel %vm120, %v1006, 0
  %1016 = vmatprep.subr.mxu0 0.0
  %1017 = vmatpush1.msra.mxu0 %v1011
  %1018 = vmatprep.subr.mxu0 0.0
  %1019 = vmatpush1.msra.mxu0 0.0
  %1020 = vmatprep.subr.mxu0 0.0
  %1021 = vmatpush1.msra.mxu0 0.0
  %1022 = vmatprep.subr.mxu0 0.0
  %1023 = vmatpush1.msra.mxu0 0.0
  %1024 = vmatprep.subr.mxu0 0.0
  %1025 = vmatpush1.msra.mxu0 0.0
  %1026 = vmatprep.subr.mxu0 0.0
  %1027 = vmatpush1.msra.mxu0 0.0
  %1028 = vmatprep.subr.mxu0 0.0
  %1029 = vmatpush1.msra.mxu0 0.0
  %1030 = vmatprep.subr.mxu0 0.0
  %1031 = vmatpush1.msra.mxu0 0.0
  %1032 = vmatprep.subr.mxu0 0.0
  %1033 = vmatpush1.msra.mxu0 0.0
  %1034 = vmatprep.subr.mxu0 0.0
  %1035 = vmatpush1.msra.mxu0 0.0
  %1036 = vmatprep.subr.mxu0 0.0
  %1037 = vmatpush1.msra.mxu0 0.0
  %1038 = vmatprep.subr.mxu0 0.0
  %1039 = vmatpush1.msra.mxu0 0.0
  %1040 = vmatprep.subr.mxu0 0.0
  %1041 = vmatpush1.msra.mxu0 0.0
  %1042 = vmatprep.subr.mxu0 0.0
  %1043 = vmatpush1.msra.mxu0 0.0
  %1044 = vmatprep.subr.mxu0 0.0
  %1045 = vmatpush1.msra.mxu0 0.0
  %1046 = vmatprep.subr.mxu0 0.0
  %1047 = vmatpush1.msra.mxu0 0.0
  %1048 = vmatprep.subr.mxu0 0.0
  %1049 = vmatpush1.msra.mxu0 0.0
  %1050 = vmatprep.subr.mxu0 0.0
  %1051 = vmatpush1.msra.mxu0 0.0
  %1052 = vmatprep.subr.mxu0 0.0
  %1053 = vmatpush1.msra.mxu0 0.0
  %1054 = vmatprep.subr.mxu0 0.0
  %1055 = vmatpush1.msra.mxu0 0.0
  %1056 = vmatprep.subr.mxu0 0.0
  %1057 = vmatpush1.msra.mxu0 0.0
  %1058 = vmatprep.subr.mxu0 0.0
  %1059 = vmatpush1.msra.mxu0 0.0
  %1060 = vmatprep.subr.mxu0 0.0
  %1061 = vmatpush1.msra.mxu0 0.0
  %1062 = vmatprep.subr.mxu0 0.0
  %1063 = vmatpush1.msra.mxu0 0.0
  %1064 = vmatprep.subr.mxu0 0.0
  %1065 = vmatpush1.msra.mxu0 0.0
  %1066 = vmatprep.subr.mxu0 0.0
  %1067 = vmatpush1.msra.mxu0 0.0
  %1068 = vmatprep.subr.mxu0 0.0
  %1069 = vmatpush1.msra.mxu0 0.0
  %1070 = vmatprep.subr.mxu0 0.0
  %1071 = vmatpush1.msra.mxu0 0.0
  %1072 = vmatprep.subr.mxu0 0.0
  %1073 = vmatpush1.msra.mxu0 0.0
  %1074 = vmatprep.subr.mxu0 0.0
  %1075 = vmatpush1.msra.mxu0 0.0
  %1076 = vmatprep.subr.mxu0 0.0
  %1077 = vmatpush1.msra.mxu0 0.0
  %1078 = vmatprep.subr.mxu0 0.0
  %1079 = vmatpush1.msra.mxu0 0.0
  %1080 = vmatprep.mubr.f32.mxu0 0.0
  %1081 = vmatmul.mubr.f32.gmra.mrb[0].mxu0 %v1014
  %v1082 = vpop.f32.mrb[0].mxu0
  %v1083 = vadd.f32 0.0, %v1082
  %v1084 = vpop.f32.mrb[0].mxu0
  %1085 = vdwg.mxu0
  %v1086 = vadd.f32 %v843, %v1083
  %1087 = vrot.lane.b32.xlu0 %v29, 32
  %v1088 = vpop.permute.xlu0 %1087
  %v1090 = vadd.f32 %v1086, %v1088
  %v1092 = vrot.slane %v1090, 1
  %1093 = vrot.lane.b32.xlu0 %v1092, 32
  %v1094 = vpop.permute.xlu0 %1093
  %v1096 = vrot.slane %v1090, 2
  %1097 = vrot.lane.b32.xlu0 %v1096, 64
  %v1098 = vpop.permute.xlu0 %1097
  %v1100 = vrot.slane %v1090, 3
  %1101 = vrot.lane.b32.xlu0 %v1100, 96
  %v1102 = vpop.permute.xlu0 %1101
  %v1104 = vrot.slane %v1090, 4
  %v1106 = vrot.slane %v1090, 5
  %1107 = vrot.lane.b32.xlu0 %v1106, 32
  %v1108 = vpop.permute.xlu0 %1107
  %v1110 = vrot.slane %v1090, 6
  %1111 = vrot.lane.b32.xlu0 %v1110, 64
  %v1112 = vpop.permute.xlu0 %1111
  %v1114 = vrot.slane %v1090, 7
  %1115 = vrot.lane.b32.xlu0 %v1114, 96
  %v1116 = vpop.permute.xlu0 %1115
  %v1118 = vsel %vm31, %v1090, %v1094
  %vm1119 = vcmask 523264
  %v1120 = vsel %vm1119, %v1118, %v1098
  %vm1121 = vcmask 785408
  %v1122 = vsel %vm1121, %v1120, %v1102
  %v1123 = vsel %vm31, %v1104, %v1108
  %v1124 = vsel %vm1119, %v1123, %v1112
  %v1125 = vsel %vm1121, %v1124, %v1116
  %v1126 = vlaneseq
  %v1127 = vshrl.u32 %v1126, 7
  %v1128 = vsub.s32 1, %v1127
  %v1129 = vrot.slane %v24, %v1128
  %1131 = vrot.lane.b32.xlu0 %v110, 96
  %v1132 = vpop.permute.xlu0 %1131
  %v1133 = vsel %vm120, %v110, 0
  %v1135 = vsel %vm120, %v1132, 0
  %1137 = vmatprep.subr.mxu0 0.0
  %1138 = vmatpush1.xpose.msra.mxu0 %v1135
  %1139 = vmatprep.subr.mxu0 0.0
  %1140 = vmatpush1.xpose.msra.mxu0 0.0
  %1141 = vmatprep.subr.mxu0 0.0
  %1142 = vmatpush1.xpose.msra.mxu0 0.0
  %1143 = vmatprep.subr.mxu0 0.0
  %1144 = vmatpush1.xpose.msra.mxu0 0.0
  %1145 = vmatprep.subr.mxu0 0.0
  %1146 = vmatpush1.xpose.msra.mxu0 0.0
  %1147 = vmatprep.subr.mxu0 0.0
  %1148 = vmatpush1.xpose.msra.mxu0 0.0
  %1149 = vmatprep.subr.mxu0 0.0
  %1150 = vmatpush1.xpose.msra.mxu0 0.0
  %1151 = vmatprep.subr.mxu0 0.0
  %1152 = vmatpush1.xpose.msra.mxu0 0.0
  %1153 = vmatprep.subr.mxu0 0.0
  %1154 = vmatpush1.xpose.msra.mxu0 0.0
  %1155 = vmatprep.subr.mxu0 0.0
  %1156 = vmatpush1.xpose.msra.mxu0 0.0
  %1157 = vmatprep.subr.mxu0 0.0
  %1158 = vmatpush1.xpose.msra.mxu0 0.0
  %1159 = vmatprep.subr.mxu0 0.0
  %1160 = vmatpush1.xpose.msra.mxu0 0.0
  %1161 = vmatprep.subr.mxu0 0.0
  %1162 = vmatpush1.xpose.msra.mxu0 0.0
  %1163 = vmatprep.subr.mxu0 0.0
  %1164 = vmatpush1.xpose.msra.mxu0 0.0
  %1165 = vmatprep.subr.mxu0 0.0
  %1166 = vmatpush1.xpose.msra.mxu0 0.0
  %1167 = vmatprep.subr.mxu0 0.0
  %1168 = vmatpush1.xpose.msra.mxu0 0.0
  %1169 = vmatprep.subr.mxu0 0.0
  %1170 = vmatpush1.xpose.msra.mxu0 0.0
  %1171 = vmatprep.subr.mxu0 0.0
  %1172 = vmatpush1.xpose.msra.mxu0 0.0
  %1173 = vmatprep.subr.mxu0 0.0
  %1174 = vmatpush1.xpose.msra.mxu0 0.0
  %1175 = vmatprep.subr.mxu0 0.0
  %1176 = vmatpush1.xpose.msra.mxu0 0.0
  %1177 = vmatprep.subr.mxu0 0.0
  %1178 = vmatpush1.xpose.msra.mxu0 0.0
  %1179 = vmatprep.subr.mxu0 0.0
  %1180 = vmatpush1.xpose.msra.mxu0 0.0
  %1181 = vmatprep.subr.mxu0 0.0
  %1182 = vmatpush1.xpose.msra.mxu0 0.0
  %1183 = vmatprep.subr.mxu0 0.0
  %1184 = vmatpush1.xpose.msra.mxu0 0.0
  %1185 = vmatprep.subr.mxu0 0.0
  %1186 = vmatpush1.xpose.msra.mxu0 0.0
  %1187 = vmatprep.subr.mxu0 0.0
  %1188 = vmatpush1.xpose.msra.mxu0 0.0
  %1189 = vmatprep.subr.mxu0 0.0
  %1190 = vmatpush1.xpose.msra.mxu0 0.0
  %1191 = vmatprep.subr.mxu0 0.0
  %1192 = vmatpush1.xpose.msra.mxu0 0.0
  %1193 = vmatprep.subr.mxu0 0.0
  %1194 = vmatpush1.xpose.msra.mxu0 0.0
  %1195 = vmatprep.subr.mxu0 0.0
  %1196 = vmatpush1.xpose.msra.mxu0 0.0
  %1197 = vmatprep.subr.mxu0 0.0
  %1198 = vmatpush1.xpose.msra.mxu0 0.0
  %1199 = vmatprep.subr.mxu0 0.0
  %1200 = vmatpush1.xpose.msra.mxu0 0.0
  %1201 = vmatprep.mubr.f32.mxu0 0.0
  %1202 = vmatmul.mubr.f32.gmra.mrb[0].mxu0 %v1133
  %v1203 = vpop.f32.mrb[0].mxu0
  %v1204 = vadd.f32 %v1129, %v1203
  %v1205 = vpop.f32.mrb[0].mxu0
  %1206 = vdwg.mxu0
  %v1207 = vsel %vm120, %v1204, -inf
  %1208 = vmax.xlane.f32.xlu0 %v1207
  %v1209 = vpop.xlane.xlu0 %1208
  %v1210 = vsub.f32 %v1204, %v1209
  %v1211 = vmul.f32 %v1210, 1.442695
  %v1212 = vpow.pop %v1211
  %v1213 = vsel %vm120, %v1212, 0.0
  %1214 = vadd.xlane.f32.xlu0 %v1213
  %v1215 = vpop.xlane.xlu0 %1214
  %v1216 = vrcp.pop %v1215
  %v1217 = vmul.f32 %v1212, %v1216
  %1218 = vrot.lane.b32.xlu0 %v110, 64
  %v1219 = vpop.permute.xlu0 %1218
  %v1222 = vsel %vm120, %v1217, 0
  %1224 = vmatprep.subr.mxu0 0.0
  %1225 = vmatpush1.msra.mxu0 %v1219
  %1226 = vmatprep.subr.mxu0 0.0
  %1227 = vmatpush1.msra.mxu0 0.0
  %1228 = vmatprep.subr.mxu0 0.0
  %1229 = vmatpush1.msra.mxu0 0.0
  %1230 = vmatprep.subr.mxu0 0.0
  %1231 = vmatpush1.msra.mxu0 0.0
  %1232 = vmatprep.subr.mxu0 0.0
  %1233 = vmatpush1.msra.mxu0 0.0
  %1234 = vmatprep.subr.mxu0 0.0
  %1235 = vmatpush1.msra.mxu0 0.0
  %1236 = vmatprep.subr.mxu0 0.0
  %1237 = vmatpush1.msra.mxu0 0.0
  %1238 = vmatprep.subr.mxu0 0.0
  %1239 = vmatpush1.msra.mxu0 0.0
  %1240 = vmatprep.subr.mxu0 0.0
  %1241 = vmatpush1.msra.mxu0 0.0
  %1242 = vmatprep.subr.mxu0 0.0
  %1243 = vmatpush1.msra.mxu0 0.0
  %1244 = vmatprep.subr.mxu0 0.0
  %1245 = vmatpush1.msra.mxu0 0.0
  %1246 = vmatprep.subr.mxu0 0.0
  %1247 = vmatpush1.msra.mxu0 0.0
  %1248 = vmatprep.subr.mxu0 0.0
  %1249 = vmatpush1.msra.mxu0 0.0
  %1250 = vmatprep.subr.mxu0 0.0
  %1251 = vmatpush1.msra.mxu0 0.0
  %1252 = vmatprep.subr.mxu0 0.0
  %1253 = vmatpush1.msra.mxu0 0.0
  %1254 = vmatprep.subr.mxu0 0.0
  %1255 = vmatpush1.msra.mxu0 0.0
  %1256 = vmatprep.subr.mxu0 0.0
  %1257 = vmatpush1.msra.mxu0 0.0
  %1258 = vmatprep.subr.mxu0 0.0
  %1259 = vmatpush1.msra.mxu0 0.0
  %1260 = vmatprep.subr.mxu0 0.0
  %1261 = vmatpush1.msra.mxu0 0.0
  %1262 = vmatprep.subr.mxu0 0.0
  %1263 = vmatpush1.msra.mxu0 0.0
  %1264 = vmatprep.subr.mxu0 0.0
  %1265 = vmatpush1.msra.mxu0 0.0
  %1266 = vmatprep.subr.mxu0 0.0
  %1267 = vmatpush1.msra.mxu0 0.0
  %1268 = vmatprep.subr.mxu0 0.0
  %1269 = vmatpush1.msra.mxu0 0.0
  %1270 = vmatprep.subr.mxu0 0.0
  %1271 = vmatpush1.msra.mxu0 0.0
  %1272 = vmatprep.subr.mxu0 0.0
  %1273 = vmatpush1.msra.mxu0 0.0
  %1274 = vmatprep.subr.mxu0 0.0
  %1275 = vmatpush1.msra.mxu0 0.0
  %1276 = vmatprep.subr.mxu0 0.0
  %1277 = vmatpush1.msra.mxu0 0.0
  %1278 = vmatprep.subr.mxu0 0.0
  %1279 = vmatpush1.msra.mxu0 0.0
  %1280 = vmatprep.subr.mxu0 0.0
  %1281 = vmatpush1.msra.mxu0 0.0
  %1282 = vmatprep.subr.mxu0 0.0
  %1283 = vmatpush1.msra.mxu0 0.0
  %1284 = vmatprep.subr.mxu0 0.0
  %1285 = vmatpush1.msra.mxu0 0.0
  %1286 = vmatprep.subr.mxu0 0.0
  %1287 = vmatpush1.msra.mxu0 0.0
  %1288 = vmatprep.mubr.f32.mxu0 0.0
  %1289 = vmatmul.mubr.f32.gmra.mrb[0].mxu0 %v1222
  %v1290 = vpop.f32.mrb[0].mxu0
  %v1291 = vadd.f32 0.0, %v1290
  %v1292 = vpop.f32.mrb[0].mxu0
  %1293 = vdwg.mxu0
  %1294 = vrot.lane.b32.xlu0 %v110, 120
  %v1295 = vpop.permute.xlu0 %1294
  %1296 = vrot.lane.b32.xlu0 %v110, 88
  %v1297 = vpop.permute.xlu0 %1296
  %v1298 = vsel %vm120, %v1295, 0
  %v1300 = vsel %vm120, %v1297, 0
  %1302 = vmatprep.subr.mxu0 0.0
  %1303 = vmatpush1.xpose.msra.mxu0 %v1300
  %1304 = vmatprep.subr.mxu0 0.0
  %1305 = vmatpush1.xpose.msra.mxu0 0.0
  %1306 = vmatprep.subr.mxu0 0.0
  %1307 = vmatpush1.xpose.msra.mxu0 0.0
  %1308 = vmatprep.subr.mxu0 0.0
  %1309 = vmatpush1.xpose.msra.mxu0 0.0
  %1310 = vmatprep.subr.mxu0 0.0
  %1311 = vmatpush1.xpose.msra.mxu0 0.0
  %1312 = vmatprep.subr.mxu0 0.0
  %1313 = vmatpush1.xpose.msra.mxu0 0.0
  %1314 = vmatprep.subr.mxu0 0.0
  %1315 = vmatpush1.xpose.msra.mxu0 0.0
  %1316 = vmatprep.subr.mxu0 0.0
  %1317 = vmatpush1.xpose.msra.mxu0 0.0
  %1318 = vmatprep.subr.mxu0 0.0
  %1319 = vmatpush1.xpose.msra.mxu0 0.0
  %1320 = vmatprep.subr.mxu0 0.0
  %1321 = vmatpush1.xpose.msra.mxu0 0.0
  %1322 = vmatprep.subr.mxu0 0.0
  %1323 = vmatpush1.xpose.msra.mxu0 0.0
  %1324 = vmatprep.subr.mxu0 0.0
  %1325 = vmatpush1.xpose.msra.mxu0 0.0
  %1326 = vmatprep.subr.mxu0 0.0
  %1327 = vmatpush1.xpose.msra.mxu0 0.0
  %1328 = vmatprep.subr.mxu0 0.0
  %1329 = vmatpush1.xpose.msra.mxu0 0.0
  %1330 = vmatprep.subr.mxu0 0.0
  %1331 = vmatpush1.xpose.msra.mxu0 0.0
  %1332 = vmatprep.subr.mxu0 0.0
  %1333 = vmatpush1.xpose.msra.mxu0 0.0
  %1334 = vmatprep.subr.mxu0 0.0
  %1335 = vmatpush1.xpose.msra.mxu0 0.0
  %1336 = vmatprep.subr.mxu0 0.0
  %1337 = vmatpush1.xpose.msra.mxu0 0.0
  %1338 = vmatprep.subr.mxu0 0.0
  %1339 = vmatpush1.xpose.msra.mxu0 0.0
  %1340 = vmatprep.subr.mxu0 0.0
  %1341 = vmatpush1.xpose.msra.mxu0 0.0
  %1342 = vmatprep.subr.mxu0 0.0
  %1343 = vmatpush1.xpose.msra.mxu0 0.0
  %1344 = vmatprep.subr.mxu0 0.0
  %1345 = vmatpush1.xpose.msra.mxu0 0.0
  %1346 = vmatprep.subr.mxu0 0.0
  %1347 = vmatpush1.xpose.msra.mxu0 0.0
  %1348 = vmatprep.subr.mxu0 0.0
  %1349 = vmatpush1.xpose.msra.mxu0 0.0
  %1350 = vmatprep.subr.mxu0 0.0
  %1351 = vmatpush1.xpose.msra.mxu0 0.0
  %1352 = vmatprep.subr.mxu0 0.0
  %1353 = vmatpush1.xpose.msra.mxu0 0.0
  %1354 = vmatprep.subr.mxu0 0.0
  %1355 = vmatpush1.xpose.msra.mxu0 0.0
  %1356 = vmatprep.subr.mxu0 0.0
  %1357 = vmatpush1.xpose.msra.mxu0 0.0
  %1358 = vmatprep.subr.mxu0 0.0
  %1359 = vmatpush1.xpose.msra.mxu0 0.0
  %1360 = vmatprep.subr.mxu0 0.0
  %1361 = vmatpush1.xpose.msra.mxu0 0.0
  %1362 = vmatprep.subr.mxu0 0.0
  %1363 = vmatpush1.xpose.msra.mxu0 0.0
  %1364 = vmatprep.subr.mxu0 0.0
  %1365 = vmatpush1.xpose.msra.mxu0 0.0
  %1366 = vmatprep.mubr.f32.mxu0 0.0
  %1367 = vmatmul.mubr.f32.gmra.mrb[0].mxu0 %v1298
  %v1368 = vpop.f32.mrb[0].mxu0
  %v1369 = vadd.f32 %v1129, %v1368
  %v1370 = vpop.f32.mrb[0].mxu0
  %1371 = vdwg.mxu0
  %v1372 = vsel %vm120, %v1369, -inf
  %1373 = vmax.xlane.f32.xlu0 %v1372
  %v1374 = vpop.xlane.xlu0 %1373
  %v1375 = vsub.f32 %v1369, %v1374
  %v1376 = vmul.f32 %v1375, 1.442695
  %v1377 = vpow.pop %v1376
  %v1378 = vsel %vm120, %v1377, 0.0
  %1379 = vadd.xlane.f32.xlu0 %v1378
  %v1380 = vpop.xlane.xlu0 %1379
  %v1381 = vrcp.pop %v1380
  %v1382 = vmul.f32 %v1377, %v1381
  %1383 = vrot.lane.b32.xlu0 %v110, 56
  %v1384 = vpop.permute.xlu0 %1383
  %v1387 = vsel %vm120, %v1382, 0
  %1389 = vmatprep.subr.mxu0 0.0
  %1390 = vmatpush1.msra.mxu0 %v1384
  %1391 = vmatprep.subr.mxu0 0.0
  %1392 = vmatpush1.msra.mxu0 0.0
  %1393 = vmatprep.subr.mxu0 0.0
  %1394 = vmatpush1.msra.mxu0 0.0
  %1395 = vmatprep.subr.mxu0 0.0
  %1396 = vmatpush1.msra.mxu0 0.0
  %1397 = vmatprep.subr.mxu0 0.0
  %1398 = vmatpush1.msra.mxu0 0.0
  %1399 = vmatprep.subr.mxu0 0.0
  %1400 = vmatpush1.msra.mxu0 0.0
  %1401 = vmatprep.subr.mxu0 0.0
  %1402 = vmatpush1.msra.mxu0 0.0
  %1403 = vmatprep.subr.mxu0 0.0
  %1404 = vmatpush1.msra.mxu0 0.0
  %1405 = vmatprep.subr.mxu0 0.0
  %1406 = vmatpush1.msra.mxu0 0.0
  %1407 = vmatprep.subr.mxu0 0.0
  %1408 = vmatpush1.msra.mxu0 0.0
  %1409 = vmatprep.subr.mxu0 0.0
  %1410 = vmatpush1.msra.mxu0 0.0
  %1411 = vmatprep.subr.mxu0 0.0
  %1412 = vmatpush1.msra.mxu0 0.0
  %1413 = vmatprep.subr.mxu0 0.0
  %1414 = vmatpush1.msra.mxu0 0.0
  %1415 = vmatprep.subr.mxu0 0.0
  %1416 = vmatpush1.msra.mxu0 0.0
  %1417 = vmatprep.subr.mxu0 0.0
  %1418 = vmatpush1.msra.mxu0 0.0
  %1419 = vmatprep.subr.mxu0 0.0
  %1420 = vmatpush1.msra.mxu0 0.0
  %1421 = vmatprep.subr.mxu0 0.0
  %1422 = vmatpush1.msra.mxu0 0.0
  %1423 = vmatprep.subr.mxu0 0.0
  %1424 = vmatpush1.msra.mxu0 0.0
  %1425 = vmatprep.subr.mxu0 0.0
  %1426 = vmatpush1.msra.mxu0 0.0
  %1427 = vmatprep.subr.mxu0 0.0
  %1428 = vmatpush1.msra.mxu0 0.0
  %1429 = vmatprep.subr.mxu0 0.0
  %1430 = vmatpush1.msra.mxu0 0.0
  %1431 = vmatprep.subr.mxu0 0.0
  %1432 = vmatpush1.msra.mxu0 0.0
  %1433 = vmatprep.subr.mxu0 0.0
  %1434 = vmatpush1.msra.mxu0 0.0
  %1435 = vmatprep.subr.mxu0 0.0
  %1436 = vmatpush1.msra.mxu0 0.0
  %1437 = vmatprep.subr.mxu0 0.0
  %1438 = vmatpush1.msra.mxu0 0.0
  %1439 = vmatprep.subr.mxu0 0.0
  %1440 = vmatpush1.msra.mxu0 0.0
  %1441 = vmatprep.subr.mxu0 0.0
  %1442 = vmatpush1.msra.mxu0 0.0
  %1443 = vmatprep.subr.mxu0 0.0
  %1444 = vmatpush1.msra.mxu0 0.0
  %1445 = vmatprep.subr.mxu0 0.0
  %1446 = vmatpush1.msra.mxu0 0.0
  %1447 = vmatprep.subr.mxu0 0.0
  %1448 = vmatpush1.msra.mxu0 0.0
  %1449 = vmatprep.subr.mxu0 0.0
  %1450 = vmatpush1.msra.mxu0 0.0
  %1451 = vmatprep.subr.mxu0 0.0
  %1452 = vmatpush1.msra.mxu0 0.0
  %1453 = vmatprep.mubr.f32.mxu0 0.0
  %1454 = vmatmul.mubr.f32.gmra.mrb[0].mxu0 %v1387
  %v1455 = vpop.f32.mrb[0].mxu0
  %v1456 = vadd.f32 0.0, %v1455
  %v1457 = vpop.f32.mrb[0].mxu0
  %1458 = vdwg.mxu0
  %v1460 = vsel %vm120, %v1456, 0
  %1462 = vmatprep.subr.mxu0 0.0
  %1463 = vmatpush1.msra.mxu0 %v449
  %1464 = vmatprep.subr.mxu0 0.0
  %1465 = vmatpush1.msra.mxu0 0.0
  %1466 = vmatprep.subr.mxu0 0.0
  %1467 = vmatpush1.msra.mxu0 0.0
  %1468 = vmatprep.subr.mxu0 0.0
  %1469 = vmatpush1.msra.mxu0 0.0
  %1470 = vmatprep.subr.mxu0 0.0
  %1471 = vmatpush1.msra.mxu0 0.0
  %1472 = vmatprep.subr.mxu0 0.0
  %1473 = vmatpush1.msra.mxu0 0.0
  %1474 = vmatprep.subr.mxu0 0.0
  %1475 = vmatpush1.msra.mxu0 0.0
  %1476 = vmatprep.subr.mxu0 0.0
  %1477 = vmatpush1.msra.mxu0 0.0
  %1478 = vmatprep.subr.mxu0 0.0
  %1479 = vmatpush1.msra.mxu0 0.0
  %1480 = vmatprep.subr.mxu0 0.0
  %1481 = vmatpush1.msra.mxu0 0.0
  %1482 = vmatprep.subr.mxu0 0.0
  %1483 = vmatpush1.msra.mxu0 0.0
  %1484 = vmatprep.subr.mxu0 0.0
  %1485 = vmatpush1.msra.mxu0 0.0
  %1486 = vmatprep.subr.mxu0 0.0
  %1487 = vmatpush1.msra.mxu0 0.0
  %1488 = vmatprep.subr.mxu0 0.0
  %1489 = vmatpush1.msra.mxu0 0.0
  %1490 = vmatprep.subr.mxu0 0.0
  %1491 = vmatpush1.msra.mxu0 0.0
  %1492 = vmatprep.subr.mxu0 0.0
  %1493 = vmatpush1.msra.mxu0 0.0
  %1494 = vmatprep.subr.mxu0 0.0
  %1495 = vmatpush1.msra.mxu0 0.0
  %1496 = vmatprep.subr.mxu0 0.0
  %1497 = vmatpush1.msra.mxu0 0.0
  %1498 = vmatprep.subr.mxu0 0.0
  %1499 = vmatpush1.msra.mxu0 0.0
  %1500 = vmatprep.subr.mxu0 0.0
  %1501 = vmatpush1.msra.mxu0 0.0
  %1502 = vmatprep.subr.mxu0 0.0
  %1503 = vmatpush1.msra.mxu0 0.0
  %1504 = vmatprep.subr.mxu0 0.0
  %1505 = vmatpush1.msra.mxu0 0.0
  %1506 = vmatprep.subr.mxu0 0.0
  %1507 = vmatpush1.msra.mxu0 0.0
  %1508 = vmatprep.subr.mxu0 0.0
  %1509 = vmatpush1.msra.mxu0 0.0
  %1510 = vmatprep.subr.mxu0 0.0
  %1511 = vmatpush1.msra.mxu0 0.0
  %1512 = vmatprep.subr.mxu0 0.0
  %1513 = vmatpush1.msra.mxu0 0.0
  %1514 = vmatprep.subr.mxu0 0.0
  %1515 = vmatpush1.msra.mxu0 0.0
  %1516 = vmatprep.subr.mxu0 0.0
  %1517 = vmatpush1.msra.mxu0 0.0
  %1518 = vmatprep.subr.mxu0 0.0
  %1519 = vmatpush1.msra.mxu0 0.0
  %1520 = vmatprep.subr.mxu0 0.0
  %1521 = vmatpush1.msra.mxu0 0.0
  %1522 = vmatprep.subr.mxu0 0.0
  %1523 = vmatpush1.msra.mxu0 0.0
  %1524 = vmatprep.subr.mxu0 0.0
  %1525 = vmatpush1.msra.mxu0 0.0
  %1526 = vmatprep.mubr.f32.mxu0 0.0
  %1527 = vmatmul.mubr.f32.gmra.mrb[0].mxu0 %v1460
  %v1528 = vpop.f32.mrb[0].mxu0
  %v1529 = vadd.f32 0.0, %v1528
  %v1530 = vpop.f32.mrb[0].mxu0
  %1531 = vdwg.mxu0
  %v1533 = vsel %vm120, %v1291, 0
  %1535 = vmatprep.subr.mxu0 0.0
  %1536 = vmatpush1.msra.mxu0 %v526
  %1537 = vmatprep.subr.mxu0 0.0
  %1538 = vmatpush1.msra.mxu0 0.0
  %1539 = vmatprep.subr.mxu0 0.0
  %1540 = vmatpush1.msra.mxu0 0.0
  %1541 = vmatprep.subr.mxu0 0.0
  %1542 = vmatpush1.msra.mxu0 0.0
  %1543 = vmatprep.subr.mxu0 0.0
  %1544 = vmatpush1.msra.mxu0 0.0
  %1545 = vmatprep.subr.mxu0 0.0
  %1546 = vmatpush1.msra.mxu0 0.0
  %1547 = vmatprep.subr.mxu0 0.0
  %1548 = vmatpush1.msra.mxu0 0.0
  %1549 = vmatprep.subr.mxu0 0.0
  %1550 = vmatpush1.msra.mxu0 0.0
  %1551 = vmatprep.subr.mxu0 0.0
  %1552 = vmatpush1.msra.mxu0 0.0
  %1553 = vmatprep.subr.mxu0 0.0
  %1554 = vmatpush1.msra.mxu0 0.0
  %1555 = vmatprep.subr.mxu0 0.0
  %1556 = vmatpush1.msra.mxu0 0.0
  %1557 = vmatprep.subr.mxu0 0.0
  %1558 = vmatpush1.msra.mxu0 0.0
  %1559 = vmatprep.subr.mxu0 0.0
  %1560 = vmatpush1.msra.mxu0 0.0
  %1561 = vmatprep.subr.mxu0 0.0
  %1562 = vmatpush1.msra.mxu0 0.0
  %1563 = vmatprep.subr.mxu0 0.0
  %1564 = vmatpush1.msra.mxu0 0.0
  %1565 = vmatprep.subr.mxu0 0.0
  %1566 = vmatpush1.msra.mxu0 0.0
  %1567 = vmatprep.subr.mxu0 0.0
  %1568 = vmatpush1.msra.mxu0 0.0
  %1569 = vmatprep.subr.mxu0 0.0
  %1570 = vmatpush1.msra.mxu0 0.0
  %1571 = vmatprep.subr.mxu0 0.0
  %1572 = vmatpush1.msra.mxu0 0.0
  %1573 = vmatprep.subr.mxu0 0.0
  %1574 = vmatpush1.msra.mxu0 0.0
  %1575 = vmatprep.subr.mxu0 0.0
  %1576 = vmatpush1.msra.mxu0 0.0
  %1577 = vmatprep.subr.mxu0 0.0
  %1578 = vmatpush1.msra.mxu0 0.0
  %1579 = vmatprep.subr.mxu0 0.0
  %1580 = vmatpush1.msra.mxu0 0.0
  %1581 = vmatprep.subr.mxu0 0.0
  %1582 = vmatpush1.msra.mxu0 0.0
  %1583 = vmatprep.subr.mxu0 0.0
  %1584 = vmatpush1.msra.mxu0 0.0
  %1585 = vmatprep.subr.mxu0 0.0
  %1586 = vmatpush1.msra.mxu0 0.0
  %1587 = vmatprep.subr.mxu0 0.0
  %1588 = vmatpush1.msra.mxu0 0.0
  %1589 = vmatprep.subr.mxu0 0.0
  %1590 = vmatpush1.msra.mxu0 0.0
  %1591 = vmatprep.subr.mxu0 0.0
  %1592 = vmatpush1.msra.mxu0 0.0
  %1593 = vmatprep.subr.mxu0 0.0
  %1594 = vmatpush1.msra.mxu0 0.0
  %1595 = vmatprep.subr.mxu0 0.0
  %1596 = vmatpush1.msra.mxu0 0.0
  %1597 = vmatprep.subr.mxu0 0.0
  %1598 = vmatpush1.msra.mxu0 0.0
  %1599 = vmatprep.mubr.f32.mxu0 0.0
  %1600 = vmatmul.mubr.f32.gmra.mrb[0].mxu0 %v1533
  %v1601 = vpop.f32.mrb[0].mxu0
  %v1602 = vadd.f32 %v1529, %v1601
  %v1603 = vpop.f32.mrb[0].mxu0
  %1604 = vdwg.mxu0
  %1605 = vrot.lane.b32.xlu0 %v110, 112
  %v1606 = vpop.permute.xlu0 %1605
  %1607 = vrot.lane.b32.xlu0 %v110, 80
  %v1608 = vpop.permute.xlu0 %1607
  %v1609 = vsel %vm120, %v1606, 0
  %v1611 = vsel %vm120, %v1608, 0
  %1613 = vmatprep.subr.mxu0 0.0
  %1614 = vmatpush1.xpose.msra.mxu0 %v1611
  %1615 = vmatprep.subr.mxu0 0.0
  %1616 = vmatpush1.xpose.msra.mxu0 0.0
  %1617 = vmatprep.subr.mxu0 0.0
  %1618 = vmatpush1.xpose.msra.mxu0 0.0
  %1619 = vmatprep.subr.mxu0 0.0
  %1620 = vmatpush1.xpose.msra.mxu0 0.0
  %1621 = vmatprep.subr.mxu0 0.0
  %1622 = vmatpush1.xpose.msra.mxu0 0.0
  %1623 = vmatprep.subr.mxu0 0.0
  %1624 = vmatpush1.xpose.msra.mxu0 0.0
  %1625 = vmatprep.subr.mxu0 0.0
  %1626 = vmatpush1.xpose.msra.mxu0 0.0
  %1627 = vmatprep.subr.mxu0 0.0
  %1628 = vmatpush1.xpose.msra.mxu0 0.0
  %1629 = vmatprep.subr.mxu0 0.0
  %1630 = vmatpush1.xpose.msra.mxu0 0.0
  %1631 = vmatprep.subr.mxu0 0.0
  %1632 = vmatpush1.xpose.msra.mxu0 0.0
  %1633 = vmatprep.subr.mxu0 0.0
  %1634 = vmatpush1.xpose.msra.mxu0 0.0
  %1635 = vmatprep.subr.mxu0 0.0
  %1636 = vmatpush1.xpose.msra.mxu0 0.0
  %1637 = vmatprep.subr.mxu0 0.0
  %1638 = vmatpush1.xpose.msra.mxu0 0.0
  %1639 = vmatprep.subr.mxu0 0.0
  %1640 = vmatpush1.xpose.msra.mxu0 0.0
  %1641 = vmatprep.subr.mxu0 0.0
  %1642 = vmatpush1.xpose.msra.mxu0 0.0
  %1643 = vmatprep.subr.mxu0 0.0
  %1644 = vmatpush1.xpose.msra.mxu0 0.0
  %1645 = vmatprep.subr.mxu0 0.0
  %1646 = vmatpush1.xpose.msra.mxu0 0.0
  %1647 = vmatprep.subr.mxu0 0.0
  %1648 = vmatpush1.xpose.msra.mxu0 0.0
  %1649 = vmatprep.subr.mxu0 0.0
  %1650 = vmatpush1.xpose.msra.mxu0 0.0
  %1651 = vmatprep.subr.mxu0 0.0
  %1652 = vmatpush1.xpose.msra.mxu0 0.0
  %1653 = vmatprep.subr.mxu0 0.0
  %1654 = vmatpush1.xpose.msra.mxu0 0.0
  %1655 = vmatprep.subr.mxu0 0.0
  %1656 = vmatpush1.xpose.msra.mxu0 0.0
  %1657 = vmatprep.subr.mxu0 0.0
  %1658 = vmatpush1.xpose.msra.mxu0 0.0
  %1659 = vmatprep.subr.mxu0 0.0
  %1660 = vmatpush1.xpose.msra.mxu0 0.0
  %1661 = vmatprep.subr.mxu0 0.0
  %1662 = vmatpush1.xpose.msra.mxu0 0.0
  %1663 = vmatprep.subr.mxu0 0.0
  %1664 = vmatpush1.xpose.msra.mxu0 0.0
  %1665 = vmatprep.subr.mxu0 0.0
  %1666 = vmatpush1.xpose.msra.mxu0 0.0
  %1667 = vmatprep.subr.mxu0 0.0
  %1668 = vmatpush1.xpose.msra.mxu0 0.0
  %1669 = vmatprep.subr.mxu0 0.0
  %1670 = vmatpush1.xpose.msra.mxu0 0.0
  %1671 = vmatprep.subr.mxu0 0.0
  %1672 = vmatpush1.xpose.msra.mxu0 0.0
  %1673 = vmatprep.subr.mxu0 0.0
  %1674 = vmatpush1.xpose.msra.mxu0 0.0
  %1675 = vmatprep.subr.mxu0 0.0
  %1676 = vmatpush1.xpose.msra.mxu0 0.0
  %1677 = vmatprep.mubr.f32.mxu0 0.0
  %1678 = vmatmul.mubr.f32.gmra.mrb[0].mxu0 %v1609
  %v1679 = vpop.f32.mrb[0].mxu0
  %v1680 = vadd.f32 %v1129, %v1679
  %v1681 = vpop.f32.mrb[0].mxu0
  %1682 = vdwg.mxu0
  %v1683 = vsel %vm120, %v1680, -inf
  %1684 = vmax.xlane.f32.xlu0 %v1683
  %v1685 = vpop.xlane.xlu0 %1684
  %v1686 = vsub.f32 %v1680, %v1685
  %v1687 = vmul.f32 %v1686, 1.442695
  %v1688 = vpow.pop %v1687
  %v1689 = vsel %vm120, %v1688, 0.0
  %1690 = vadd.xlane.f32.xlu0 %v1689
  %v1691 = vpop.xlane.xlu0 %1690
  %v1692 = vrcp.pop %v1691
  %v1693 = vmul.f32 %v1688, %v1692
  %1694 = vrot.lane.b32.xlu0 %v110, 48
  %v1695 = vpop.permute.xlu0 %1694
  %v1698 = vsel %vm120, %v1693, 0
  %1700 = vmatprep.subr.mxu0 0.0
  %1701 = vmatpush1.msra.mxu0 %v1695
  %1702 = vmatprep.subr.mxu0 0.0
  %1703 = vmatpush1.msra.mxu0 0.0
  %1704 = vmatprep.subr.mxu0 0.0
  %1705 = vmatpush1.msra.mxu0 0.0
  %1706 = vmatprep.subr.mxu0 0.0
  %1707 = vmatpush1.msra.mxu0 0.0
  %1708 = vmatprep.subr.mxu0 0.0
  %1709 = vmatpush1.msra.mxu0 0.0
  %1710 = vmatprep.subr.mxu0 0.0
  %1711 = vmatpush1.msra.mxu0 0.0
  %1712 = vmatprep.subr.mxu0 0.0
  %1713 = vmatpush1.msra.mxu0 0.0
  %1714 = vmatprep.subr.mxu0 0.0
  %1715 = vmatpush1.msra.mxu0 0.0
  %1716 = vmatprep.subr.mxu0 0.0
  %1717 = vmatpush1.msra.mxu0 0.0
  %1718 = vmatprep.subr.mxu0 0.0
  %1719 = vmatpush1.msra.mxu0 0.0
  %1720 = vmatprep.subr.mxu0 0.0
  %1721 = vmatpush1.msra.mxu0 0.0
  %1722 = vmatprep.subr.mxu0 0.0
  %1723 = vmatpush1.msra.mxu0 0.0
  %1724 = vmatprep.subr.mxu0 0.0
  %1725 = vmatpush1.msra.mxu0 0.0
  %1726 = vmatprep.subr.mxu0 0.0
  %1727 = vmatpush1.msra.mxu0 0.0
  %1728 = vmatprep.subr.mxu0 0.0
  %1729 = vmatpush1.msra.mxu0 0.0
  %1730 = vmatprep.subr.mxu0 0.0
  %1731 = vmatpush1.msra.mxu0 0.0
  %1732 = vmatprep.subr.mxu0 0.0
  %1733 = vmatpush1.msra.mxu0 0.0
  %1734 = vmatprep.subr.mxu0 0.0
  %1735 = vmatpush1.msra.mxu0 0.0
  %1736 = vmatprep.subr.mxu0 0.0
  %1737 = vmatpush1.msra.mxu0 0.0
  %1738 = vmatprep.subr.mxu0 0.0
  %1739 = vmatpush1.msra.mxu0 0.0
  %1740 = vmatprep.subr.mxu0 0.0
  %1741 = vmatpush1.msra.mxu0 0.0
  %1742 = vmatprep.subr.mxu0 0.0
  %1743 = vmatpush1.msra.mxu0 0.0
  %1744 = vmatprep.subr.mxu0 0.0
  %1745 = vmatpush1.msra.mxu0 0.0
  %1746 = vmatprep.subr.mxu0 0.0
  %1747 = vmatpush1.msra.mxu0 0.0
  %1748 = vmatprep.subr.mxu0 0.0
  %1749 = vmatpush1.msra.mxu0 0.0
  %1750 = vmatprep.subr.mxu0 0.0
  %1751 = vmatpush1.msra.mxu0 0.0
  %1752 = vmatprep.subr.mxu0 0.0
  %1753 = vmatpush1.msra.mxu0 0.0
  %1754 = vmatprep.subr.mxu0 0.0
  %1755 = vmatpush1.msra.mxu0 0.0
  %1756 = vmatprep.subr.mxu0 0.0
  %1757 = vmatpush1.msra.mxu0 0.0
  %1758 = vmatprep.subr.mxu0 0.0
  %1759 = vmatpush1.msra.mxu0 0.0
  %1760 = vmatprep.subr.mxu0 0.0
  %1761 = vmatpush1.msra.mxu0 0.0
  %1762 = vmatprep.subr.mxu0 0.0
  %1763 = vmatpush1.msra.mxu0 0.0
  %1764 = vmatprep.mubr.f32.mxu0 0.0
  %1765 = vmatmul.mubr.f32.gmra.mrb[0].mxu0 %v1698
  %v1766 = vpop.f32.mrb[0].mxu0
  %v1767 = vadd.f32 0.0, %v1766
  %v1768 = vpop.f32.mrb[0].mxu0
  %1769 = vdwg.mxu0
  %v1771 = vsel %vm120, %v1767, 0
  %1773 = vmatprep.subr.mxu0 0.0
  %1774 = vmatpush1.msra.mxu0 %v768
  %1775 = vmatprep.subr.mxu0 0.0
  %1776 = vmatpush1.msra.mxu0 0.0
  %1777 = vmatprep.subr.mxu0 0.0
  %1778 = vmatpush1.msra.mxu0 0.0
  %1779 = vmatprep.subr.mxu0 0.0
  %1780 = vmatpush1.msra.mxu0 0.0
  %1781 = vmatprep.subr.mxu0 0.0
  %1782 = vmatpush1.msra.mxu0 0.0
  %1783 = vmatprep.subr.mxu0 0.0
  %1784 = vmatpush1.msra.mxu0 0.0
  %1785 = vmatprep.subr.mxu0 0.0
  %1786 = vmatpush1.msra.mxu0 0.0
  %1787 = vmatprep.subr.mxu0 0.0
  %1788 = vmatpush1.msra.mxu0 0.0
  %1789 = vmatprep.subr.mxu0 0.0
  %1790 = vmatpush1.msra.mxu0 0.0
  %1791 = vmatprep.subr.mxu0 0.0
  %1792 = vmatpush1.msra.mxu0 0.0
  %1793 = vmatprep.subr.mxu0 0.0
  %1794 = vmatpush1.msra.mxu0 0.0
  %1795 = vmatprep.subr.mxu0 0.0
  %1796 = vmatpush1.msra.mxu0 0.0
  %1797 = vmatprep.subr.mxu0 0.0
  %1798 = vmatpush1.msra.mxu0 0.0
  %1799 = vmatprep.subr.mxu0 0.0
  %1800 = vmatpush1.msra.mxu0 0.0
  %1801 = vmatprep.subr.mxu0 0.0
  %1802 = vmatpush1.msra.mxu0 0.0
  %1803 = vmatprep.subr.mxu0 0.0
  %1804 = vmatpush1.msra.mxu0 0.0
  %1805 = vmatprep.subr.mxu0 0.0
  %1806 = vmatpush1.msra.mxu0 0.0
  %1807 = vmatprep.subr.mxu0 0.0
  %1808 = vmatpush1.msra.mxu0 0.0
  %1809 = vmatprep.subr.mxu0 0.0
  %1810 = vmatpush1.msra.mxu0 0.0
  %1811 = vmatprep.subr.mxu0 0.0
  %1812 = vmatpush1.msra.mxu0 0.0
  %1813 = vmatprep.subr.mxu0 0.0
  %1814 = vmatpush1.msra.mxu0 0.0
  %1815 = vmatprep.subr.mxu0 0.0
  %1816 = vmatpush1.msra.mxu0 0.0
  %1817 = vmatprep.subr.mxu0 0.0
  %1818 = vmatpush1.msra.mxu0 0.0
  %1819 = vmatprep.subr.mxu0 0.0
  %1820 = vmatpush1.msra.mxu0 0.0
  %1821 = vmatprep.subr.mxu0 0.0
  %1822 = vmatpush1.msra.mxu0 0.0
  %1823 = vmatprep.subr.mxu0 0.0
  %1824 = vmatpush1.msra.mxu0 0.0
  %1825 = vmatprep.subr.mxu0 0.0
  %1826 = vmatpush1.msra.mxu0 0.0
  %1827 = vmatprep.subr.mxu0 0.0
  %1828 = vmatpush1.msra.mxu0 0.0
  %1829 = vmatprep.subr.mxu0 0.0
  %1830 = vmatpush1.msra.mxu0 0.0
  %1831 = vmatprep.subr.mxu0 0.0
  %1832 = vmatpush1.msra.mxu0 0.0
  %1833 = vmatprep.subr.mxu0 0.0
  %1834 = vmatpush1.msra.mxu0 0.0
  %1835 = vmatprep.subr.mxu0 0.0
  %1836 = vmatpush1.msra.mxu0 0.0
  %1837 = vmatprep.mubr.f32.mxu0 0.0
  %1838 = vmatmul.mubr.f32.gmra.mrb[0].mxu0 %v1771
  %v1839 = vpop.f32.mrb[0].mxu0
  %v1840 = vadd.f32 0.0, %v1839
  %v1841 = vpop.f32.mrb[0].mxu0
  %1842 = vdwg.mxu0
  %v1843 = vadd.f32 %v1602, %v1840
  %1844 = vrot.lane.b32.xlu0 %v110, 104
  %v1845 = vpop.permute.xlu0 %1844
  %1846 = vrot.lane.b32.xlu0 %v110, 72
  %v1847 = vpop.permute.xlu0 %1846
  %v1848 = vsel %vm120, %v1845, 0
  %v1850 = vsel %vm120, %v1847, 0
  %1852 = vmatprep.subr.mxu0 0.0
  %1853 = vmatpush1.xpose.msra.mxu0 %v1850
  %1854 = vmatprep.subr.mxu0 0.0
  %1855 = vmatpush1.xpose.msra.mxu0 0.0
  %1856 = vmatprep.subr.mxu0 0.0
  %1857 = vmatpush1.xpose.msra.mxu0 0.0
  %1858 = vmatprep.subr.mxu0 0.0
  %1859 = vmatpush1.xpose.msra.mxu0 0.0
  %1860 = vmatprep.subr.mxu0 0.0
  %1861 = vmatpush1.xpose.msra.mxu0 0.0
  %1862 = vmatprep.subr.mxu0 0.0
  %1863 = vmatpush1.xpose.msra.mxu0 0.0
  %1864 = vmatprep.subr.mxu0 0.0
  %1865 = vmatpush1.xpose.msra.mxu0 0.0
  %1866 = vmatprep.subr.mxu0 0.0
  %1867 = vmatpush1.xpose.msra.mxu0 0.0
  %1868 = vmatprep.subr.mxu0 0.0
  %1869 = vmatpush1.xpose.msra.mxu0 0.0
  %1870 = vmatprep.subr.mxu0 0.0
  %1871 = vmatpush1.xpose.msra.mxu0 0.0
  %1872 = vmatprep.subr.mxu0 0.0
  %1873 = vmatpush1.xpose.msra.mxu0 0.0
  %1874 = vmatprep.subr.mxu0 0.0
  %1875 = vmatpush1.xpose.msra.mxu0 0.0
  %1876 = vmatprep.subr.mxu0 0.0
  %1877 = vmatpush1.xpose.msra.mxu0 0.0
  %1878 = vmatprep.subr.mxu0 0.0
  %1879 = vmatpush1.xpose.msra.mxu0 0.0
  %1880 = vmatprep.subr.mxu0 0.0
  %1881 = vmatpush1.xpose.msra.mxu0 0.0
  %1882 = vmatprep.subr.mxu0 0.0
  %1883 = vmatpush1.xpose.msra.mxu0 0.0
  %1884 = vmatprep.subr.mxu0 0.0
  %1885 = vmatpush1.xpose.msra.mxu0 0.0
  %1886 = vmatprep.subr.mxu0 0.0
  %1887 = vmatpush1.xpose.msra.mxu0 0.0
  %1888 = vmatprep.subr.mxu0 0.0
  %1889 = vmatpush1.xpose.msra.mxu0 0.0
  %1890 = vmatprep.subr.mxu0 0.0
  %1891 = vmatpush1.xpose.msra.mxu0 0.0
  %1892 = vmatprep.subr.mxu0 0.0
  %1893 = vmatpush1.xpose.msra.mxu0 0.0
  %1894 = vmatprep.subr.mxu0 0.0
  %1895 = vmatpush1.xpose.msra.mxu0 0.0
  %1896 = vmatprep.subr.mxu0 0.0
  %1897 = vmatpush1.xpose.msra.mxu0 0.0
  %1898 = vmatprep.subr.mxu0 0.0
  %1899 = vmatpush1.xpose.msra.mxu0 0.0
  %1900 = vmatprep.subr.mxu0 0.0
  %1901 = vmatpush1.xpose.msra.mxu0 0.0
  %1902 = vmatprep.subr.mxu0 0.0
  %1903 = vmatpush1.xpose.msra.mxu0 0.0
  %1904 = vmatprep.subr.mxu0 0.0
  %1905 = vmatpush1.xpose.msra.mxu0 0.0
  %1906 = vmatprep.subr.mxu0 0.0
  %1907 = vmatpush1.xpose.msra.mxu0 0.0
  %1908 = vmatprep.subr.mxu0 0.0
  %1909 = vmatpush1.xpose.msra.mxu0 0.0
  %1910 = vmatprep.subr.mxu0 0.0
  %1911 = vmatpush1.xpose.msra.mxu0 0.0
  %1912 = vmatprep.subr.mxu0 0.0
  %1913 = vmatpush1.xpose.msra.mxu0 0.0
  %1914 = vmatprep.subr.mxu0 0.0
  %1915 = vmatpush1.xpose.msra.mxu0 0.0
  %1916 = vmatprep.mubr.f32.mxu0 0.0
  %1917 = vmatmul.mubr.f32.gmra.mrb[0].mxu0 %v1848
  %v1918 = vpop.f32.mrb[0].mxu0
  %v1919 = vadd.f32 %v1129, %v1918
  %v1920 = vpop.f32.mrb[0].mxu0
  %1921 = vdwg.mxu0
  %v1922 = vsel %vm120, %v1919, -inf
  %1923 = vmax.xlane.f32.xlu0 %v1922
  %v1924 = vpop.xlane.xlu0 %1923
  %v1925 = vsub.f32 %v1919, %v1924
  %v1926 = vmul.f32 %v1925, 1.442695
  %v1927 = vpow.pop %v1926
  %v1928 = vsel %vm120, %v1927, 0.0
  %1929 = vadd.xlane.f32.xlu0 %v1928
  %v1930 = vpop.xlane.xlu0 %1929
  %v1931 = vrcp.pop %v1930
  %v1932 = vmul.f32 %v1927, %v1931
  %1933 = vrot.lane.b32.xlu0 %v110, 40
  %v1934 = vpop.permute.xlu0 %1933
  %v1937 = vsel %vm120, %v1932, 0
  %1939 = vmatprep.subr.mxu0 0.0
  %1940 = vmatpush1.msra.mxu0 %v1934
  %1941 = vmatprep.subr.mxu0 0.0
  %1942 = vmatpush1.msra.mxu0 0.0
  %1943 = vmatprep.subr.mxu0 0.0
  %1944 = vmatpush1.msra.mxu0 0.0
  %1945 = vmatprep.subr.mxu0 0.0
  %1946 = vmatpush1.msra.mxu0 0.0
  %1947 = vmatprep.subr.mxu0 0.0
  %1948 = vmatpush1.msra.mxu0 0.0
  %1949 = vmatprep.subr.mxu0 0.0
  %1950 = vmatpush1.msra.mxu0 0.0
  %1951 = vmatprep.subr.mxu0 0.0
  %1952 = vmatpush1.msra.mxu0 0.0
  %1953 = vmatprep.subr.mxu0 0.0
  %1954 = vmatpush1.msra.mxu0 0.0
  %1955 = vmatprep.subr.mxu0 0.0
  %1956 = vmatpush1.msra.mxu0 0.0
  %1957 = vmatprep.subr.mxu0 0.0
  %1958 = vmatpush1.msra.mxu0 0.0
  %1959 = vmatprep.subr.mxu0 0.0
  %1960 = vmatpush1.msra.mxu0 0.0
  %1961 = vmatprep.subr.mxu0 0.0
  %1962 = vmatpush1.msra.mxu0 0.0
  %1963 = vmatprep.subr.mxu0 0.0
  %1964 = vmatpush1.msra.mxu0 0.0
  %1965 = vmatprep.subr.mxu0 0.0
  %1966 = vmatpush1.msra.mxu0 0.0
  %1967 = vmatprep.subr.mxu0 0.0
  %1968 = vmatpush1.msra.mxu0 0.0
  %1969 = vmatprep.subr.mxu0 0.0
  %1970 = vmatpush1.msra.mxu0 0.0
  %1971 = vmatprep.subr.mxu0 0.0
  %1972 = vmatpush1.msra.mxu0 0.0
  %1973 = vmatprep.subr.mxu0 0.0
  %1974 = vmatpush1.msra.mxu0 0.0
  %1975 = vmatprep.subr.mxu0 0.0
  %1976 = vmatpush1.msra.mxu0 0.0
  %1977 = vmatprep.subr.mxu0 0.0
  %1978 = vmatpush1.msra.mxu0 0.0
  %1979 = vmatprep.subr.mxu0 0.0
  %1980 = vmatpush1.msra.mxu0 0.0
  %1981 = vmatprep.subr.mxu0 0.0
  %1982 = vmatpush1.msra.mxu0 0.0
  %1983 = vmatprep.subr.mxu0 0.0
  %1984 = vmatpush1.msra.mxu0 0.0
  %1985 = vmatprep.subr.mxu0 0.0
  %1986 = vmatpush1.msra.mxu0 0.0
  %1987 = vmatprep.subr.mxu0 0.0
  %1988 = vmatpush1.msra.mxu0 0.0
  %1989 = vmatprep.subr.mxu0 0.0
  %1990 = vmatpush1.msra.mxu0 0.0
  %1991 = vmatprep.subr.mxu0 0.0
  %1992 = vmatpush1.msra.mxu0 0.0
  %1993 = vmatprep.subr.mxu0 0.0
  %1994 = vmatpush1.msra.mxu0 0.0
  %1995 = vmatprep.subr.mxu0 0.0
  %1996 = vmatpush1.msra.mxu0 0.0
  %1997 = vmatprep.subr.mxu0 0.0
  %1998 = vmatpush1.msra.mxu0 0.0
  %1999 = vmatprep.subr.mxu0 0.0
  %2000 = vmatpush1.msra.mxu0 0.0
  %2001 = vmatprep.subr.mxu0 0.0
  %2002 = vmatpush1.msra.mxu0 0.0
  %2003 = vmatprep.mubr.f32.mxu0 0.0
  %2004 = vmatmul.mubr.f32.gmra.mrb[0].mxu0 %v1937
  %v2005 = vpop.f32.mrb[0].mxu0
  %v2006 = vadd.f32 0.0, %v2005
  %v2007 = vpop.f32.mrb[0].mxu0
  %2008 = vdwg.mxu0
  %v2010 = vsel %vm120, %v2006, 0
  %2012 = vmatprep.subr.mxu0 0.0
  %2013 = vmatpush1.msra.mxu0 %v1011
  %2014 = vmatprep.subr.mxu0 0.0
  %2015 = vmatpush1.msra.mxu0 0.0
  %2016 = vmatprep.subr.mxu0 0.0
  %2017 = vmatpush1.msra.mxu0 0.0
  %2018 = vmatprep.subr.mxu0 0.0
  %2019 = vmatpush1.msra.mxu0 0.0
  %2020 = vmatprep.subr.mxu0 0.0
  %2021 = vmatpush1.msra.mxu0 0.0
  %2022 = vmatprep.subr.mxu0 0.0
  %2023 = vmatpush1.msra.mxu0 0.0
  %2024 = vmatprep.subr.mxu0 0.0
  %2025 = vmatpush1.msra.mxu0 0.0
  %2026 = vmatprep.subr.mxu0 0.0
  %2027 = vmatpush1.msra.mxu0 0.0
  %2028 = vmatprep.subr.mxu0 0.0
  %2029 = vmatpush1.msra.mxu0 0.0
  %2030 = vmatprep.subr.mxu0 0.0
  %2031 = vmatpush1.msra.mxu0 0.0
  %2032 = vmatprep.subr.mxu0 0.0
  %2033 = vmatpush1.msra.mxu0 0.0
  %2034 = vmatprep.subr.mxu0 0.0
  %2035 = vmatpush1.msra.mxu0 0.0
  %2036 = vmatprep.subr.mxu0 0.0
  %2037 = vmatpush1.msra.mxu0 0.0
  %2038 = vmatprep.subr.mxu0 0.0
  %2039 = vmatpush1.msra.mxu0 0.0
  %2040 = vmatprep.subr.mxu0 0.0
  %2041 = vmatpush1.msra.mxu0 0.0
  %2042 = vmatprep.subr.mxu0 0.0
  %2043 = vmatpush1.msra.mxu0 0.0
  %2044 = vmatprep.subr.mxu0 0.0
  %2045 = vmatpush1.msra.mxu0 0.0
  %2046 = vmatprep.subr.mxu0 0.0
  %2047 = vmatpush1.msra.mxu0 0.0
  %2048 = vmatprep.subr.mxu0 0.0
  %2049 = vmatpush1.msra.mxu0 0.0
  %2050 = vmatprep.subr.mxu0 0.0
  %2051 = vmatpush1.msra.mxu0 0.0
  %2052 = vmatprep.subr.mxu0 0.0
  %2053 = vmatpush1.msra.mxu0 0.0
  %2054 = vmatprep.subr.mxu0 0.0
  %2055 = vmatpush1.msra.mxu0 0.0
  %2056 = vmatprep.subr.mxu0 0.0
  %2057 = vmatpush1.msra.mxu0 0.0
  %2058 = vmatprep.subr.mxu0 0.0
  %2059 = vmatpush1.msra.mxu0 0.0
  %2060 = vmatprep.subr.mxu0 0.0
  %2061 = vmatpush1.msra.mxu0 0.0
  %2062 = vmatprep.subr.mxu0 0.0
  %2063 = vmatpush1.msra.mxu0 0.0
  %2064 = vmatprep.subr.mxu0 0.0
  %2065 = vmatpush1.msra.mxu0 0.0
  %2066 = vmatprep.subr.mxu0 0.0
  %2067 = vmatpush1.msra.mxu0 0.0
  %2068 = vmatprep.subr.mxu0 0.0
  %2069 = vmatpush1.msra.mxu0 0.0
  %2070 = vmatprep.subr.mxu0 0.0
  %2071 = vmatpush1.msra.mxu0 0.0
  %2072 = vmatprep.subr.mxu0 0.0
  %2073 = vmatpush1.msra.mxu0 0.0
  %2074 = vmatprep.subr.mxu0 0.0
  %2075 = vmatpush1.msra.mxu0 0.0
  %2076 = vmatprep.mubr.f32.mxu0 0.0
  %2077 = vmatmul.mubr.f32.gmra.mrb[0].mxu0 %v2010
  %v2078 = vpop.f32.mrb[0].mxu0
  %v2079 = vadd.f32 0.0, %v2078
  %v2080 = vpop.f32.mrb[0].mxu0
  %2081 = vdwg.mxu0
  %v2082 = vadd.f32 %v1843, %v2079
  %v2083 = vadd.f32 %v2082, %v1088
  %v2085 = vrot.slane %v2083, 1
  %2086 = vrot.lane.b32.xlu0 %v2085, 32
  %v2087 = vpop.permute.xlu0 %2086
  %v2089 = vrot.slane %v2083, 2
  %2090 = vrot.lane.b32.xlu0 %v2089, 64
  %v2091 = vpop.permute.xlu0 %2090
  %v2093 = vrot.slane %v2083, 3
  %2094 = vrot.lane.b32.xlu0 %v2093, 96
  %v2095 = vpop.permute.xlu0 %2094
  %v2097 = vrot.slane %v2083, 4
  %v2099 = vrot.slane %v2083, 5
  %2100 = vrot.lane.b32.xlu0 %v2099, 32
  %v2101 = vpop.permute.xlu0 %2100
  %v2103 = vrot.slane %v2083, 6
  %2104 = vrot.lane.b32.xlu0 %v2103, 64
  %v2105 = vpop.permute.xlu0 %2104
  %v2107 = vrot.slane %v2083, 7
  %2108 = vrot.lane.b32.xlu0 %v2107, 96
  %v2109 = vpop.permute.xlu0 %2108
  %v2111 = vsel %vm31, %v2083, %v2087
  %v2112 = vsel %vm1119, %v2111, %v2091
  %v2113 = vsel %vm1121, %v2112, %v2095
  %v2114 = vsel %vm31, %v2097, %v2101
  %v2115 = vsel %vm1119, %v2114, %v2105
  %v2116 = vsel %vm1121, %v2115, %v2109
  %v2119 = vrot.slane %v2113, 7
  %v2120 = vrot.slane %v2116, 7
  %vm2123 = vcmask 1040384
  %v2124 = vsel %vm2123, %v1122, %v2119
  %v2125 = vsel %vm2123, %v1125, %v2120
  %v2128 = vcombine.low %v2124, %v2125
  %v2130 = vunpack.c.l.s4 1983009808
  %v2131 = vunpack.c.0.s8 %v2130
  %v2132 = vlaneseq
  %v2133 = vshrl.u32 %v2132, 7
  %v2134 = vsub.s32 %v2131, %v2133
  %v2135 = vrot.slane %v2128, %v2134
  %2137 = vst [vmem:[%s4] sm:$0xf] %v2135
  // Predicated region
  $region18: #{attention_pallas.1} parent=0 // pred_check
    _
  $region19: #{attention_pallas.1} parent=0 // pred_check_branch
    %2139 = sbr.rel (0) target = $region21
  $region20: #{attention_pallas.1} parent=0 // pred_region
    _
  $region21: #{attention_pallas.1} parent=0 // pred_fallthru
    _
  // Predicated region
  $region22: #{attention_pallas.1} parent=0 // pred_check
    _
  $region23: #{attention_pallas.1} parent=0 // pred_check_branch
    %2141 = sbr.rel (0) target = $region25
  $region24: #{attention_pallas.1} parent=0 // pred_region
    _
  $region25: #{attention_pallas.1} parent=0 // pred_fallthru
    _

</llo_original>
